<compile_context>
chip_gen: v5e
topology: v5e:2x2
jax: 0.10.0
libtpu: 0.0.40
codegen_flags: <defaults>
</compile_context>

<pallas_src>
import functools

import jax
import jax.numpy as jnp
from jax.experimental import pallas as pl
from jax.experimental.pallas import tpu as pltpu

EPS = 1e-5  # nn.LayerNorm default eps


def _round_up(n, m):
    return ((n + m - 1) // m) * m


def _linear(h_f32, w_ref, b_ref):
    """h (f32) x W (bf16) on the MXU with f32 accumulation, f32 bias add."""
    return jnp.dot(h_f32.astype(jnp.bfloat16), w_ref[...],
                   preferred_element_type=jnp.float32) + b_ref[...]


def _block(h, w_ref, b_ref, g_ref, be_ref, d_true):
    """Linear -> LayerNorm(d_true real features) -> ReLU  (Dropout = identity)."""
    h = _linear(h, w_ref, b_ref)
    # Padded lanes of h are exactly 0 (zero-padded weights/bias), so plain sums
    # divided by the true feature count give exact statistics in one pass.
    inv_d = jnp.float32(1.0 / d_true)
    s1 = jnp.sum(h, axis=-1, keepdims=True)
    s2 = jnp.sum(h * h, axis=-1, keepdims=True)
    mu = s1 * inv_d
    var = s2 * inv_d - mu * mu
    h = (h - mu) * jax.lax.rsqrt(var + EPS) * g_ref[...] + be_ref[...]
    return jnp.maximum(h, 0.0)


def vqa_kernel(d1, d2,
               x_ref,
               w1_ref, b1_ref, g1_ref, be1_ref,
               w2_ref, b2_ref, g2_ref, be2_ref,
               w3_ref, b3_ref, g3_ref, be3_ref,
               wc_ref, bc_ref,
               out_ref):
    h = x_ref[...]  # f32 activations
    h = _block(h, w1_ref, b1_ref, g1_ref, be1_ref, d1)   # block1
    h = _block(h, w2_ref, b2_ref, g2_ref, be2_ref, d2)   # block2
    h = _block(h, w3_ref, b3_ref, g3_ref, be3_ref, d2)   # block3
    out_ref[...] = _linear(h, wc_ref, bc_ref).astype(out_ref.dtype)  # classifier


def _pad2(a, rows, cols, dtype):
    out = jnp.zeros((rows, cols), dtype)
    return out.at[:a.shape[0], :a.shape[1]].set(a.astype(dtype))


def vqa_model_v2(x, params, *, batch_tile=128):
    """Run the fused forward pass. params: dict as produced by init_params()."""
    B, input_dim = x.shape
    d1 = params["w1"].shape[1]          # hidden_dim
    d2 = params["w2"].shape[1]          # 2 * hidden_dim
    out_dim = params["wc"].shape[1]

    # Lane-dense padded feature sizes.
    in_p = _round_up(input_dim, 128)
    d1_p = _round_up(d1, 128)
    d2_p = _round_up(d2, 128)
    out_p = _round_up(out_dim, 128)

    # Batch tiling: clamp for tiny batches, pad batch to a multiple of the tile.
    bt = min(batch_tile, _round_up(B, 8))
    B_pad = _round_up(B, bt)

    # Pad + cast parameters: weights -> bf16 (native MXU dtype, half the DMA and
    # VMEM bytes), biases / LayerNorm params -> f32 (elementwise path stays f32).
    w1 = _pad2(params["w1"], in_p, d1_p, jnp.bfloat16)
    w2 = _pad2(params["w2"], d1_p, d2_p, jnp.bfloat16)
    w3 = _pad2(params["w3"], d2_p, d2_p, jnp.bfloat16)
    wc = _pad2(params["wc"], d2_p, out_p, jnp.bfloat16)
    b1 = _pad2(params["b1"], 1, d1_p, jnp.float32)
    b2 = _pad2(params["b2"], 1, d2_p, jnp.float32)
    b3 = _pad2(params["b3"], 1, d2_p, jnp.float32)
    bc = _pad2(params["bc"], 1, out_p, jnp.float32)
    g1 = _pad2(params["g1"], 1, d1_p, jnp.float32)
    g2 = _pad2(params["g2"], 1, d2_p, jnp.float32)
    g3 = _pad2(params["g3"], 1, d2_p, jnp.float32)
    be1 = _pad2(params["be1"], 1, d1_p, jnp.float32)
    be2 = _pad2(params["be2"], 1, d2_p, jnp.float32)
    be3 = _pad2(params["be3"], 1, d2_p, jnp.float32)

    x_p = jnp.zeros((B_pad, in_p), jnp.float32).at[:B, :input_dim].set(
        x.astype(jnp.float32))

    def rep(a):  # replicated (weight) block: full padded array every grid step
        return pl.BlockSpec(a.shape, lambda i, _n=len(a.shape): (0,) * _n)

    in_specs = [
        pl.BlockSpec((bt, in_p), lambda i: (i, 0)),          # x tile
        rep(w1), rep(b1), rep(g1), rep(be1),
        rep(w2), rep(b2), rep(g2), rep(be2),
        rep(w3), rep(b3), rep(g3), rep(be3),
        rep(wc), rep(bc),
    ]

    # Explicit VMEM budget: Pallas double-buffers every operand block.
    weight_bytes = 2 * (in_p * d1_p + d1_p * d2_p + d2_p * d2_p + d2_p * out_p)
    vector_bytes = 4 * (3 * d1_p + 6 * d2_p + 2 * out_p)
    act_bytes = 4 * bt * (in_p + out_p)
    resident = 2 * (weight_bytes + vector_bytes + act_bytes)
    vmem_limit = int(min(128 * 2**20, max(32 * 2**20, 6 * resident)))

    out_pad = pl.pallas_call(
        functools.partial(vqa_kernel, d1, d2),
        out_shape=jax.ShapeDtypeStruct((B_pad, out_p), jnp.float32),
        grid=(B_pad // bt,),
        in_specs=in_specs,
        out_specs=pl.BlockSpec((bt, out_p), lambda i: (i, 0)),
        compiler_params=pltpu.CompilerParams(
            dimension_semantics=("parallel",),
            vmem_limit_bytes=vmem_limit),
    )(x_p,
      w1, b1, g1, be1,
      w2, b2, g2, be2,
      w3, b3, g3, be3,
      wc, bc)

    return out_pad[:B, :out_dim]


def init_params(key, input_dim, hidden_dim, output_dim):
    """Deterministic synthetic init matching the PyTorch module's shapes.

    Linear weights are stored as [in, out] (transposed from torch's [out, in]).
    Biases / LN params kept as (1, features) rows for clean TPU lane layout.
    """
    h, h2 = hidden_dim, 2 * hidden_dim
    ks = jax.random.split(key, 4)

    def lin(k, fan_in, fan_out):
        kw, kb = jax.random.split(k)
        bound = 1.0 / (fan_in ** 0.5)
        w = jax.random.uniform(kw, (fan_in, fan_out), jnp.float32, -bound, bound)
        b = jax.random.uniform(kb, (1, fan_out), jnp.float32, -bound, bound)
        return w, b

    w1, b1 = lin(ks[0], input_dim, h)
    w2, b2 = lin(ks[1], h, h2)
    w3, b3 = lin(ks[2], h2, h2)
    wc, bc = lin(ks[3], h2, output_dim)
    return dict(
        w1=w1, b1=b1, g1=jnp.ones((1, h), jnp.float32), be1=jnp.zeros((1, h), jnp.float32),
        w2=w2, b2=b2, g2=jnp.ones((1, h2), jnp.float32), be2=jnp.zeros((1, h2), jnp.float32),
        w3=w3, b3=b3, g3=jnp.ones((1, h2), jnp.float32), be3=jnp.zeros((1, h2), jnp.float32),
        wc=wc, bc=bc,
    )


def vqa_model_v2_ref(x, p, matmul_dtype=jnp.float32):
    """Pure-JAX reference. matmul_dtype=bf16 mirrors the kernel's MXU numerics."""
    def lin(h, w, b):
        return jnp.dot(h.astype(matmul_dtype), w.astype(matmul_dtype),
                       preferred_element_type=jnp.float32) + b

    def ln(h, g, b):
        mu = jnp.mean(h, -1, keepdims=True)
        var = jnp.mean((h - mu) ** 2, -1, keepdims=True)
        return (h - mu) * jax.lax.rsqrt(var + EPS) * g + b

    h = jnp.maximum(ln(lin(x, p["w1"], p["b1"]), p["g1"], p["be1"]), 0.0)
    h = jnp.maximum(ln(lin(h, p["w2"], p["b2"]), p["g2"], p["be2"]), 0.0)
    h = jnp.maximum(ln(lin(h, p["w3"], p["b3"]), p["g3"], p["be3"]), 0.0)
    return lin(h, p["wc"], p["bc"])


if __name__ == "__main__":
    key = jax.random.PRNGKey(0)
    k_x, k_p = jax.random.split(key)

    # Small logical dims; batch=256 so batch_tile=128 gives 2 "parallel" steps.
    batch, input_dim, hidden_dim, output_dim = 256, 32, 32, 16
    x = jax.random.normal(k_x, (batch, input_dim), jnp.float32)
    params = init_params(k_p, input_dim, hidden_dim, output_dim)

    out = vqa_model_v2(x, params, batch_tile=128)
    out = jax.block_until_ready(out)
    assert out.shape == (batch, output_dim)

    # Tight check against a reference matching the kernel's bf16 matmul numerics.
    ref_bf16 = vqa_model_v2_ref(x, params, matmul_dtype=jnp.bfloat16)
    assert jnp.allclose(out, ref_bf16, atol=5e-3, rtol=5e-3), \
        "mismatch vs bf16-matched reference"

    # Loose check against the pure-f32 reference (bf16 MXU operands drift ~1e-2).
    ref_f32 = vqa_model_v2_ref(x, params)
    assert jnp.allclose(out, ref_f32, atol=5e-2, rtol=5e-2), \
        "mismatch vs f32 reference"

    print("KERNEL_OK")
</pallas_src>

<mosaic_0001>
module attributes {stable_mosaic.version = 11 : i64} {
  func.func @vqa_kernel(%arg0: i32, %arg1: memref<128x128xf32, #tpu.memory_space<vmem>>, %arg2: memref<128x128xbf16, #tpu.memory_space<vmem>>, %arg3: memref<1x128xf32, #tpu.memory_space<vmem>>, %arg4: memref<1x128xf32, #tpu.memory_space<vmem>>, %arg5: memref<1x128xf32, #tpu.memory_space<vmem>>, %arg6: memref<128x128xbf16, #tpu.memory_space<vmem>>, %arg7: memref<1x128xf32, #tpu.memory_space<vmem>>, %arg8: memref<1x128xf32, #tpu.memory_space<vmem>>, %arg9: memref<1x128xf32, #tpu.memory_space<vmem>>, %arg10: memref<128x128xbf16, #tpu.memory_space<vmem>>, %arg11: memref<1x128xf32, #tpu.memory_space<vmem>>, %arg12: memref<1x128xf32, #tpu.memory_space<vmem>>, %arg13: memref<1x128xf32, #tpu.memory_space<vmem>>, %arg14: memref<128x128xbf16, #tpu.memory_space<vmem>>, %arg15: memref<1x128xf32, #tpu.memory_space<vmem>>, %arg16: memref<128x128xf32, #tpu.memory_space<vmem>>) attributes {dimension_semantics = [#tpu.dimension_semantics<parallel>], iteration_bounds = array<i64: 2>, scalar_prefetch = 0 : i64, scratch_operands = 0 : i64, tpu.core_type = #tpu.core_type<tc>, window_params = [{transform_indices = @transform_0, window_bounds = array<i64: 128, 128>}, {pipeline_mode = #tpu.pipeline_mode<synchronous>, transform_indices = @transform_1, window_bounds = array<i64: 128, 128>}, {pipeline_mode = #tpu.pipeline_mode<synchronous>, transform_indices = @transform_2, window_bounds = array<i64: 1, 128>}, {pipeline_mode = #tpu.pipeline_mode<synchronous>, transform_indices = @transform_3, window_bounds = array<i64: 1, 128>}, {pipeline_mode = #tpu.pipeline_mode<synchronous>, transform_indices = @transform_4, window_bounds = array<i64: 1, 128>}, {pipeline_mode = #tpu.pipeline_mode<synchronous>, transform_indices = @transform_5, window_bounds = array<i64: 128, 128>}, {pipeline_mode = #tpu.pipeline_mode<synchronous>, transform_indices = @transform_6, window_bounds = array<i64: 1, 128>}, {pipeline_mode = #tpu.pipeline_mode<synchronous>, transform_indices = @transform_7, window_bounds = array<i64: 1, 128>}, {pipeline_mode = #tpu.pipeline_mode<synchronous>, transform_indices = @transform_8, window_bounds = array<i64: 1, 128>}, {pipeline_mode = #tpu.pipeline_mode<synchronous>, transform_indices = @transform_9, window_bounds = array<i64: 128, 128>}, {pipeline_mode = #tpu.pipeline_mode<synchronous>, transform_indices = @transform_10, window_bounds = array<i64: 1, 128>}, {pipeline_mode = #tpu.pipeline_mode<synchronous>, transform_indices = @transform_11, window_bounds = array<i64: 1, 128>}, {pipeline_mode = #tpu.pipeline_mode<synchronous>, transform_indices = @transform_12, window_bounds = array<i64: 1, 128>}, {pipeline_mode = #tpu.pipeline_mode<synchronous>, transform_indices = @transform_13, window_bounds = array<i64: 128, 128>}, {pipeline_mode = #tpu.pipeline_mode<synchronous>, transform_indices = @transform_14, window_bounds = array<i64: 1, 128>}, {transform_indices = @transform_15, window_bounds = array<i64: 128, 128>}]} {
    %c0 = arith.constant 0 : index
    %c0_0 = arith.constant 0 : index
    %0 = vector.load %arg1[%c0, %c0_0] : memref<128x128xf32, #tpu.memory_space<vmem>>, vector<128x128xf32>
    %1 = arith.truncf %0 : vector<128x128xf32> to vector<128x128xbf16>
    %c0_1 = arith.constant 0 : index
    %c0_2 = arith.constant 0 : index
    %2 = vector.load %arg2[%c0_1, %c0_2] : memref<128x128xbf16, #tpu.memory_space<vmem>>, vector<128x128xbf16>
    %cst = arith.constant dense<0.000000e+00> : vector<128x128xf32>
    %3 = tpu.matmul %1, %2, %cst {dimension_numbers = #tpu.dot_dimension_numbers<[1], [0], [0], [1], [0, 0, 1, 1], [], []>} : vector<128x128xbf16>, vector<128x128xbf16>, vector<128x128xf32> -> vector<128x128xf32>
    %c0_3 = arith.constant 0 : index
    %c0_4 = arith.constant 0 : index
    %4 = vector.load %arg3[%c0_3, %c0_4] : memref<1x128xf32, #tpu.memory_space<vmem>>, vector<1x128xf32>
    %5 = vector.broadcast %4 : vector<1x128xf32> to vector<128x128xf32>
    %6 = arith.addf %3, %5 : vector<128x128xf32>
    %cst_5 = arith.constant dense<0.000000e+00> : vector<128xf32>
    %7 = vector.multi_reduction <add>, %6, %cst_5 [1] : vector<128x128xf32> to vector<128xf32>
    %8 = vector.shape_cast %7 : vector<128xf32> to vector<128x1xf32>
    %9 = arith.mulf %6, %6 : vector<128x128xf32>
    %cst_6 = arith.constant dense<0.000000e+00> : vector<128xf32>
    %10 = vector.multi_reduction <add>, %9, %cst_6 [1] : vector<128x128xf32> to vector<128xf32>
    %11 = vector.shape_cast %10 : vector<128xf32> to vector<128x1xf32>
    %cst_7 = arith.constant 3.125000e-02 : f32
    %12 = vector.broadcast %cst_7 : f32 to vector<128x1xf32>
    %13 = arith.mulf %8, %12 : vector<128x1xf32>
    %cst_8 = arith.constant 3.125000e-02 : f32
    %14 = vector.broadcast %cst_8 : f32 to vector<128x1xf32>
    %15 = arith.mulf %11, %14 : vector<128x1xf32>
    %16 = arith.mulf %13, %13 : vector<128x1xf32>
    %17 = arith.subf %15, %16 : vector<128x1xf32>
    %18 = vector.broadcast %13 : vector<128x1xf32> to vector<128x128xf32>
    %19 = arith.subf %6, %18 : vector<128x128xf32>
    %cst_9 = arith.constant 9.99999974E-6 : f32
    %20 = vector.broadcast %cst_9 : f32 to vector<128x1xf32>
    %21 = arith.addf %17, %20 : vector<128x1xf32>
    %22 = math.rsqrt %21 : vector<128x1xf32>
    %23 = vector.broadcast %22 : vector<128x1xf32> to vector<128x128xf32>
    %24 = arith.mulf %19, %23 : vector<128x128xf32>
    %c0_10 = arith.constant 0 : index
    %c0_11 = arith.constant 0 : index
    %25 = vector.load %arg4[%c0_10, %c0_11] : memref<1x128xf32, #tpu.memory_space<vmem>>, vector<1x128xf32>
    %26 = vector.broadcast %25 : vector<1x128xf32> to vector<128x128xf32>
    %27 = arith.mulf %24, %26 : vector<128x128xf32>
    %c0_12 = arith.constant 0 : index
    %c0_13 = arith.constant 0 : index
    %28 = vector.load %arg5[%c0_12, %c0_13] : memref<1x128xf32, #tpu.memory_space<vmem>>, vector<1x128xf32>
    %29 = vector.broadcast %28 : vector<1x128xf32> to vector<128x128xf32>
    %30 = arith.addf %27, %29 : vector<128x128xf32>
    %cst_14 = arith.constant 0.000000e+00 : f32
    %31 = vector.broadcast %cst_14 : f32 to vector<128x128xf32>
    %32 = arith.maximumf %30, %31 : vector<128x128xf32>
    %33 = arith.truncf %32 : vector<128x128xf32> to vector<128x128xbf16>
    %c0_15 = arith.constant 0 : index
    %c0_16 = arith.constant 0 : index
    %34 = vector.load %arg6[%c0_15, %c0_16] : memref<128x128xbf16, #tpu.memory_space<vmem>>, vector<128x128xbf16>
    %cst_17 = arith.constant dense<0.000000e+00> : vector<128x128xf32>
    %35 = tpu.matmul %33, %34, %cst_17 {dimension_numbers = #tpu.dot_dimension_numbers<[1], [0], [0], [1], [0, 0, 1, 1], [], []>} : vector<128x128xbf16>, vector<128x128xbf16>, vector<128x128xf32> -> vector<128x128xf32>
    %c0_18 = arith.constant 0 : index
    %c0_19 = arith.constant 0 : index
    %36 = vector.load %arg7[%c0_18, %c0_19] : memref<1x128xf32, #tpu.memory_space<vmem>>, vector<1x128xf32>
    %37 = vector.broadcast %36 : vector<1x128xf32> to vector<128x128xf32>
    %38 = arith.addf %35, %37 : vector<128x128xf32>
    %cst_20 = arith.constant dense<0.000000e+00> : vector<128xf32>
    %39 = vector.multi_reduction <add>, %38, %cst_20 [1] : vector<128x128xf32> to vector<128xf32>
    %40 = vector.shape_cast %39 : vector<128xf32> to vector<128x1xf32>
    %41 = arith.mulf %38, %38 : vector<128x128xf32>
    %cst_21 = arith.constant dense<0.000000e+00> : vector<128xf32>
    %42 = vector.multi_reduction <add>, %41, %cst_21 [1] : vector<128x128xf32> to vector<128xf32>
    %43 = vector.shape_cast %42 : vector<128xf32> to vector<128x1xf32>
    %cst_22 = arith.constant 1.562500e-02 : f32
    %44 = vector.broadcast %cst_22 : f32 to vector<128x1xf32>
    %45 = arith.mulf %40, %44 : vector<128x1xf32>
    %cst_23 = arith.constant 1.562500e-02 : f32
    %46 = vector.broadcast %cst_23 : f32 to vector<128x1xf32>
    %47 = arith.mulf %43, %46 : vector<128x1xf32>
    %48 = arith.mulf %45, %45 : vector<128x1xf32>
    %49 = arith.subf %47, %48 : vector<128x1xf32>
    %50 = vector.broadcast %45 : vector<128x1xf32> to vector<128x128xf32>
    %51 = arith.subf %38, %50 : vector<128x128xf32>
    %cst_24 = arith.constant 9.99999974E-6 : f32
    %52 = vector.broadcast %cst_24 : f32 to vector<128x1xf32>
    %53 = arith.addf %49, %52 : vector<128x1xf32>
    %54 = math.rsqrt %53 : vector<128x1xf32>
    %55 = vector.broadcast %54 : vector<128x1xf32> to vector<128x128xf32>
    %56 = arith.mulf %51, %55 : vector<128x128xf32>
    %c0_25 = arith.constant 0 : index
    %c0_26 = arith.constant 0 : index
    %57 = vector.load %arg8[%c0_25, %c0_26] : memref<1x128xf32, #tpu.memory_space<vmem>>, vector<1x128xf32>
    %58 = vector.broadcast %57 : vector<1x128xf32> to vector<128x128xf32>
    %59 = arith.mulf %56, %58 : vector<128x128xf32>
    %c0_27 = arith.constant 0 : index
    %c0_28 = arith.constant 0 : index
    %60 = vector.load %arg9[%c0_27, %c0_28] : memref<1x128xf32, #tpu.memory_space<vmem>>, vector<1x128xf32>
    %61 = vector.broadcast %60 : vector<1x128xf32> to vector<128x128xf32>
    %62 = arith.addf %59, %61 : vector<128x128xf32>
    %cst_29 = arith.constant 0.000000e+00 : f32
    %63 = vector.broadcast %cst_29 : f32 to vector<128x128xf32>
    %64 = arith.maximumf %62, %63 : vector<128x128xf32>
    %65 = arith.truncf %64 : vector<128x128xf32> to vector<128x128xbf16>
    %c0_30 = arith.constant 0 : index
    %c0_31 = arith.constant 0 : index
    %66 = vector.load %arg10[%c0_30, %c0_31] : memref<128x128xbf16, #tpu.memory_space<vmem>>, vector<128x128xbf16>
    %cst_32 = arith.constant dense<0.000000e+00> : vector<128x128xf32>
    %67 = tpu.matmul %65, %66, %cst_32 {dimension_numbers = #tpu.dot_dimension_numbers<[1], [0], [0], [1], [0, 0, 1, 1], [], []>} : vector<128x128xbf16>, vector<128x128xbf16>, vector<128x128xf32> -> vector<128x128xf32>
    %c0_33 = arith.constant 0 : index
    %c0_34 = arith.constant 0 : index
    %68 = vector.load %arg11[%c0_33, %c0_34] : memref<1x128xf32, #tpu.memory_space<vmem>>, vector<1x128xf32>
    %69 = vector.broadcast %68 : vector<1x128xf32> to vector<128x128xf32>
    %70 = arith.addf %67, %69 : vector<128x128xf32>
    %cst_35 = arith.constant dense<0.000000e+00> : vector<128xf32>
    %71 = vector.multi_reduction <add>, %70, %cst_35 [1] : vector<128x128xf32> to vector<128xf32>
    %72 = vector.shape_cast %71 : vector<128xf32> to vector<128x1xf32>
    %73 = arith.mulf %70, %70 : vector<128x128xf32>
    %cst_36 = arith.constant dense<0.000000e+00> : vector<128xf32>
    %74 = vector.multi_reduction <add>, %73, %cst_36 [1] : vector<128x128xf32> to vector<128xf32>
    %75 = vector.shape_cast %74 : vector<128xf32> to vector<128x1xf32>
    %cst_37 = arith.constant 1.562500e-02 : f32
    %76 = vector.broadcast %cst_37 : f32 to vector<128x1xf32>
    %77 = arith.mulf %72, %76 : vector<128x1xf32>
    %cst_38 = arith.constant 1.562500e-02 : f32
    %78 = vector.broadcast %cst_38 : f32 to vector<128x1xf32>
    %79 = arith.mulf %75, %78 : vector<128x1xf32>
    %80 = arith.mulf %77, %77 : vector<128x1xf32>
    %81 = arith.subf %79, %80 : vector<128x1xf32>
    %82 = vector.broadcast %77 : vector<128x1xf32> to vector<128x128xf32>
    %83 = arith.subf %70, %82 : vector<128x128xf32>
    %cst_39 = arith.constant 9.99999974E-6 : f32
    %84 = vector.broadcast %cst_39 : f32 to vector<128x1xf32>
    %85 = arith.addf %81, %84 : vector<128x1xf32>
    %86 = math.rsqrt %85 : vector<128x1xf32>
    %87 = vector.broadcast %86 : vector<128x1xf32> to vector<128x128xf32>
    %88 = arith.mulf %83, %87 : vector<128x128xf32>
    %c0_40 = arith.constant 0 : index
    %c0_41 = arith.constant 0 : index
    %89 = vector.load %arg12[%c0_40, %c0_41] : memref<1x128xf32, #tpu.memory_space<vmem>>, vector<1x128xf32>
    %90 = vector.broadcast %89 : vector<1x128xf32> to vector<128x128xf32>
    %91 = arith.mulf %88, %90 : vector<128x128xf32>
    %c0_42 = arith.constant 0 : index
    %c0_43 = arith.constant 0 : index
    %92 = vector.load %arg13[%c0_42, %c0_43] : memref<1x128xf32, #tpu.memory_space<vmem>>, vector<1x128xf32>
    %93 = vector.broadcast %92 : vector<1x128xf32> to vector<128x128xf32>
    %94 = arith.addf %91, %93 : vector<128x128xf32>
    %cst_44 = arith.constant 0.000000e+00 : f32
    %95 = vector.broadcast %cst_44 : f32 to vector<128x128xf32>
    %96 = arith.maximumf %94, %95 : vector<128x128xf32>
    %97 = arith.truncf %96 : vector<128x128xf32> to vector<128x128xbf16>
    %c0_45 = arith.constant 0 : index
    %c0_46 = arith.constant 0 : index
    %98 = vector.load %arg14[%c0_45, %c0_46] : memref<128x128xbf16, #tpu.memory_space<vmem>>, vector<128x128xbf16>
    %cst_47 = arith.constant dense<0.000000e+00> : vector<128x128xf32>
    %99 = tpu.matmul %97, %98, %cst_47 {dimension_numbers = #tpu.dot_dimension_numbers<[1], [0], [0], [1], [0, 0, 1, 1], [], []>} : vector<128x128xbf16>, vector<128x128xbf16>, vector<128x128xf32> -> vector<128x128xf32>
    %c0_48 = arith.constant 0 : index
    %c0_49 = arith.constant 0 : index
    %100 = vector.load %arg15[%c0_48, %c0_49] : memref<1x128xf32, #tpu.memory_space<vmem>>, vector<1x128xf32>
    %101 = vector.broadcast %100 : vector<1x128xf32> to vector<128x128xf32>
    %102 = arith.addf %99, %101 : vector<128x128xf32>
    %c0_50 = arith.constant 0 : index
    %c0_51 = arith.constant 0 : index
    %103 = vector.load %arg16[%c0_50, %c0_51] : memref<128x128xf32, #tpu.memory_space<vmem>>, vector<128x128xf32>
    tpu.vector_store %arg16[%c0_50, %c0_51], %102 {strides = array<i32>} : memref<128x128xf32, #tpu.memory_space<vmem>>, vector<128x128xf32>,
    return
  }
  func.func @transform_0(%arg0: i32) -> (i32, i32) {
    %c0_i32 = arith.constant 0 : i32
    %c0_i32_0 = arith.constant 0 : i32
    return %arg0, %c0_i32 : i32, i32
  }
  func.func @transform_1(%arg0: i32) -> (i32, i32) {
    %c0_i32 = arith.constant 0 : i32
    %c0_i32_0 = arith.constant 0 : i32
    %c0_i32_1 = arith.constant 0 : i32
    return %c0_i32, %c0_i32_0 : i32, i32
  }
  func.func @transform_2(%arg0: i32) -> (i32, i32) {
    %c0_i32 = arith.constant 0 : i32
    %c0_i32_0 = arith.constant 0 : i32
    %c0_i32_1 = arith.constant 0 : i32
    return %c0_i32, %c0_i32_0 : i32, i32
  }
  func.func @transform_3(%arg0: i32) -> (i32, i32) {
    %c0_i32 = arith.constant 0 : i32
    %c0_i32_0 = arith.constant 0 : i32
    %c0_i32_1 = arith.constant 0 : i32
    return %c0_i32, %c0_i32_0 : i32, i32
  }
  func.func @transform_4(%arg0: i32) -> (i32, i32) {
    %c0_i32 = arith.constant 0 : i32
    %c0_i32_0 = arith.constant 0 : i32
    %c0_i32_1 = arith.constant 0 : i32
    return %c0_i32, %c0_i32_0 : i32, i32
  }
  func.func @transform_5(%arg0: i32) -> (i32, i32) {
    %c0_i32 = arith.constant 0 : i32
    %c0_i32_0 = arith.constant 0 : i32
    %c0_i32_1 = arith.constant 0 : i32
    return %c0_i32, %c0_i32_0 : i32, i32
  }
  func.func @transform_6(%arg0: i32) -> (i32, i32) {
    %c0_i32 = arith.constant 0 : i32
    %c0_i32_0 = arith.constant 0 : i32
    %c0_i32_1 = arith.constant 0 : i32
    return %c0_i32, %c0_i32_0 : i32, i32
  }
  func.func @transform_7(%arg0: i32) -> (i32, i32) {
    %c0_i32 = arith.constant 0 : i32
    %c0_i32_0 = arith.constant 0 : i32
    %c0_i32_1 = arith.constant 0 : i32
    return %c0_i32, %c0_i32_0 : i32, i32
  }
  func.func @transform_8(%arg0: i32) -> (i32, i32) {
    %c0_i32 = arith.constant 0 : i32
    %c0_i32_0 = arith.constant 0 : i32
    %c0_i32_1 = arith.constant 0 : i32
    return %c0_i32, %c0_i32_0 : i32, i32
  }
  func.func @transform_9(%arg0: i32) -> (i32, i32) {
    %c0_i32 = arith.constant 0 : i32
    %c0_i32_0 = arith.constant 0 : i32
    %c0_i32_1 = arith.constant 0 : i32
    return %c0_i32, %c0_i32_0 : i32, i32
  }
  func.func @transform_10(%arg0: i32) -> (i32, i32) {
    %c0_i32 = arith.constant 0 : i32
    %c0_i32_0 = arith.constant 0 : i32
    %c0_i32_1 = arith.constant 0 : i32
    return %c0_i32, %c0_i32_0 : i32, i32
  }
  func.func @transform_11(%arg0: i32) -> (i32, i32) {
    %c0_i32 = arith.constant 0 : i32
    %c0_i32_0 = arith.constant 0 : i32
    %c0_i32_1 = arith.constant 0 : i32
    return %c0_i32, %c0_i32_0 : i32, i32
  }
  func.func @transform_12(%arg0: i32) -> (i32, i32) {
    %c0_i32 = arith.constant 0 : i32
    %c0_i32_0 = arith.constant 0 : i32
    %c0_i32_1 = arith.constant 0 : i32
    return %c0_i32, %c0_i32_0 : i32, i32
  }
  func.func @transform_13(%arg0: i32) -> (i32, i32) {
    %c0_i32 = arith.constant 0 : i32
    %c0_i32_0 = arith.constant 0 : i32
    %c0_i32_1 = arith.constant 0 : i32
    return %c0_i32, %c0_i32_0 : i32, i32
  }
  func.func @transform_14(%arg0: i32) -> (i32, i32) {
    %c0_i32 = arith.constant 0 : i32
    %c0_i32_0 = arith.constant 0 : i32
    %c0_i32_1 = arith.constant 0 : i32
    return %c0_i32, %c0_i32_0 : i32, i32
  }
  func.func @transform_15(%arg0: i32) -> (i32, i32) {
    %c0_i32 = arith.constant 0 : i32
    %c0_i32_0 = arith.constant 0 : i32
    return %arg0, %c0_i32 : i32, i32
  }
}

</mosaic_0001>

<llo_original>
// kernel: tpu_custom_call.1
$region0: #{tpu_custom_call.1}
  #allocation0 [shape = 'u32[]', space=smem, size = 0x4, offset = 0x4, fixed_abs, tag = 'smem constant byte address 0x4 - core index']
  #allocation1 [shape = 'u32[72,128]{1,0:T(1,128)}', space=vmem, size = 0x9000, scoped, tag = 'internal scratch']
  %s0 = inlined_call_operand.hbm [shape: f32[256,128], index: 0, kind: input, shape index: {}]
  %s1 = inlined_call_operand.hbm [shape: bf16[128,128], index: 1, kind: input, shape index: {}]
  %s2 = inlined_call_operand.vmem [shape: f32[1,128], index: 2, kind: input, shape index: {}]
  %s3 = inlined_call_operand.vmem [shape: f32[1,128], index: 3, kind: input, shape index: {}]
  %s4 = inlined_call_operand.vmem [shape: f32[1,128], index: 4, kind: input, shape index: {}]
  %s5 = inlined_call_operand.hbm [shape: bf16[128,128], index: 5, kind: input, shape index: {}]
  %s6 = inlined_call_operand.vmem [shape: f32[1,128], index: 6, kind: input, shape index: {}]
  %s7 = inlined_call_operand.vmem [shape: f32[1,128], index: 7, kind: input, shape index: {}]
  %s8 = inlined_call_operand.vmem [shape: f32[1,128], index: 8, kind: input, shape index: {}]
  %s9 = inlined_call_operand.hbm [shape: bf16[128,128], index: 9, kind: input, shape index: {}]
  %s10 = inlined_call_operand.vmem [shape: f32[1,128], index: 10, kind: input, shape index: {}]
  %s11 = inlined_call_operand.vmem [shape: f32[1,128], index: 11, kind: input, shape index: {}]
  %s12 = inlined_call_operand.vmem [shape: f32[1,128], index: 12, kind: input, shape index: {}]
  %s13 = inlined_call_operand.hbm [shape: bf16[128,128], index: 13, kind: input, shape index: {}]
  %s14 = inlined_call_operand.vmem [shape: f32[1,128], index: 14, kind: input, shape index: {}]
  %s15 = inlined_call_operand.hbm [shape: f32[256,128], index: 15, kind: output, shape index: {}]
  %s16 = sld [smem:[#allocation0]]
  $region113: #{tpu_custom_call.1} parent=0
    _
  %s18 = ssub.s32 1, %s16
  %s19 = scalar_select 0, %s18, %s16
  $region1: #{tpu_custom_call.1} parent=0
    #allocation2 [shape = 'u8[131072]{0}', space=vmem, size = 0x20000, scoped, tag = 'input window, operand 0']
    #allocation3 [shape = 's32[2]{0}', space=sflag, size = 0x8, scoped, tag = 'scoped memory for tpu_custom_call.1']
    #allocation4 [shape = 's32[2]{0}', space=sflag, size = 0x8, scoped, tag = 'scoped memory for tpu_custom_call.1']
    #allocation5 [shape = 'u8[32768]{0}', space=vmem, size = 0x8000, scoped, tag = 'input window, operand 1, single buffered']
    #allocation6 [shape = 's32[1]{0}', space=sflag, size = 0x4, scoped, tag = 'scoped memory for tpu_custom_call.1']
    #allocation7 [shape = 'u8[32768]{0}', space=vmem, size = 0x8000, scoped, tag = 'input window, operand 5, single buffered']
    #allocation8 [shape = 'u8[32768]{0}', space=vmem, size = 0x8000, scoped, tag = 'input window, operand 9, single buffered']
    #allocation9 [shape = 's32[1]{0}', space=sflag, size = 0x4, scoped, tag = 'scoped memory for tpu_custom_call.1']
    #allocation10 [shape = 'u8[32768]{0}', space=vmem, size = 0x8000, scoped, tag = 'input window, operand 13, single buffered']
    #allocation11 [shape = 'u8[131072]{0}', space=vmem, size = 0x20000, scoped, tag = 'output window, operand 0']
    %20 = vsyncpa [#allocation3], 0
    %s21 = scalar_lea.sflag [#allocation3], 1
    %22 = vsyncpa %s21, 0
    %23 = vsyncpa [#allocation6], 0
    %24 = vsyncpa [#allocation9], 0
    %25 = vsyncpa [#allocation4], 0
    %s26 = scalar_lea.sflag [#allocation4], 1
    %27 = vsyncpa %s26, 0
    loop: start=0, step=1, limit=4
    $region2: #{tpu_custom_call.1} parent=1 // loop_pre_header
      _
    $region3: #{tpu_custom_call.1} parent=1 // loop_header
      %s29 = sphi 0, %s33
      %p30 = scmp.ge.s32.totalorder %s29, 4
      %s39 = sphi 0, %s41
      %s42 = sphi 0, %s39
      %s43 = sphi 0, %s42
      %s59 = sphi 0, %s43
      %s63 = sphi 0, %s63
      %s65 = sphi 0, %s63
      %s66 = sphi 0, %s65
      %s80 = sphi 0, %s66
      %s84 = sphi 0, %s84
      %s86 = sphi 0, %s84
      %s87 = sphi 0, %s86
      %s101 = sphi 0, %s87
      %s105 = sphi 0, %s105
      %s107 = sphi 0, %s105
      %s108 = sphi 0, %s107
      %s122 = sphi 0, %s108
      %s126 = sphi 0, %s126
      %s128 = sphi 0, %s126
      %s129 = sphi 0, %s128
      %s143 = sphi 0, %s129
      %s147 = sphi 0, %s147
      %s149 = sphi 0, %s147
      %s150 = sphi 0, %s149
      %s164 = sphi 0, %s150
      %s168 = sphi 0, %s168
      %s170 = sphi 0, %s168
      %s171 = sphi 0, %s170
      %s185 = sphi 0, %s171
      %s189 = sphi 0, %s189
      %s191 = sphi 0, %s189
      %s192 = sphi 0, %s191
      %s206 = sphi 0, %s192
      %s210 = sphi 0, %s210
      %s212 = sphi 0, %s210
      %s213 = sphi 0, %s212
      %s227 = sphi 0, %s213
      %s231 = sphi 0, %s231
      %s233 = sphi 0, %s231
      %s234 = sphi 0, %s233
      %s248 = sphi 0, %s234
      %s252 = sphi 0, %s252
      %s254 = sphi 0, %s252
      %s255 = sphi 0, %s254
      %s269 = sphi 0, %s255
      %s273 = sphi 0, %s273
      %s275 = sphi 0, %s273
      %s276 = sphi 0, %s275
      %s290 = sphi 0, %s276
      %s294 = sphi 0, %s294
      %s296 = sphi 0, %s294
      %s297 = sphi 0, %s296
      %s311 = sphi 0, %s297
      %s315 = sphi 0, %s315
      %s317 = sphi 0, %s315
      %s318 = sphi 0, %s317
      %s332 = sphi 0, %s318
      %s336 = sphi 0, %s336
      %s338 = sphi 0, %s336
      %s339 = sphi 0, %s338
      %s353 = sphi 0, %s339
      %s359 = sphi 0, %s361
      %s362 = sphi 0, %s359
      %s363 = sphi 0, %s362
      %s379 = sphi 0, %s363
    $region4: #{tpu_custom_call.1} parent=1 // loop_header_branch
      %32 = sbr.rel (%p30) target = $region8
    $region5: #{tpu_custom_call.1} parent=1 // loop_body
      %s34 = ssub.s32 %s29, 1
      %s35 = ssub.s32 %s29, 2
      %s36 = sadd.s32 %s29, 1
      %s37 = ssub.s32 %s29, %s36
      %p38 = scmp.eq.s32.totalorder %s37, 0
      %s40 = sadd.s32 %s39, 1
      %s41 = scalar_select %p38, %s39, %s40
      %p44 = pneg %p38
      %p45 = scmp.eq.s32.totalorder %s29, 1
      %p46 = por %p44, %p45
      %p47 = scmp.ne.s32.totalorder %s39, %s42
      %p48 = scmp.eq.s32.totalorder %s29, 0
      %p49 = por %p47, %p48
      %p50 = scmp.ne.s32.totalorder %s39, %s42
      %p51 = scmp.eq.s32.totalorder %s34, 1
      %p52 = por %p50, %p51
      %p53 = scmp.ne.s32.totalorder %s42, %s43
      %p54 = scmp.eq.s32.totalorder %s34, 0
      %p55 = por %p53, %p54
      %p56 = scmp.ne.s32.totalorder %s42, %s43
      %p57 = scmp.eq.s32.totalorder %s35, 1
      %p58 = por %p56, %p57
      %p60 = scmp.ne.s32.totalorder %s43, %s59
      %p61 = scmp.eq.s32.totalorder %s35, 0
      %p62 = por %p60, %p61
      %s64 = sadd.s32 %s63, 1
      %p67 = scmp.eq.s32.totalorder %s29, 1
      %p68 = scmp.ne.s32.totalorder %s63, %s65
      %p69 = scmp.eq.s32.totalorder %s29, 0
      %p70 = por %p68, %p69
      %p71 = scmp.ne.s32.totalorder %s63, %s65
      %p72 = scmp.eq.s32.totalorder %s34, 1
      %p73 = por %p71, %p72
      %p74 = scmp.ne.s32.totalorder %s65, %s66
      %p75 = scmp.eq.s32.totalorder %s34, 0
      %p76 = por %p74, %p75
      %p77 = scmp.ne.s32.totalorder %s65, %s66
      %p78 = scmp.eq.s32.totalorder %s35, 1
      %p79 = por %p77, %p78
      %p81 = scmp.ne.s32.totalorder %s66, %s80
      %p82 = scmp.eq.s32.totalorder %s35, 0
      %p83 = por %p81, %p82
      %s85 = sadd.s32 %s84, 1
      %p88 = scmp.eq.s32.totalorder %s29, 1
      %p89 = scmp.ne.s32.totalorder %s84, %s86
      %p90 = scmp.eq.s32.totalorder %s29, 0
      %p91 = por %p89, %p90
      %p92 = scmp.ne.s32.totalorder %s84, %s86
      %p93 = scmp.eq.s32.totalorder %s34, 1
      %p94 = por %p92, %p93
      %p95 = scmp.ne.s32.totalorder %s86, %s87
      %p96 = scmp.eq.s32.totalorder %s34, 0
      %p97 = por %p95, %p96
      %p98 = scmp.ne.s32.totalorder %s86, %s87
      %p99 = scmp.eq.s32.totalorder %s35, 1
      %p100 = por %p98, %p99
      %p102 = scmp.ne.s32.totalorder %s87, %s101
      %p103 = scmp.eq.s32.totalorder %s35, 0
      %p104 = por %p102, %p103
      %s106 = sadd.s32 %s105, 1
      %p109 = scmp.eq.s32.totalorder %s29, 1
      %p110 = scmp.ne.s32.totalorder %s105, %s107
      %p111 = scmp.eq.s32.totalorder %s29, 0
      %p112 = por %p110, %p111
      %p113 = scmp.ne.s32.totalorder %s105, %s107
      %p114 = scmp.eq.s32.totalorder %s34, 1
      %p115 = por %p113, %p114
      %p116 = scmp.ne.s32.totalorder %s107, %s108
      %p117 = scmp.eq.s32.totalorder %s34, 0
      %p118 = por %p116, %p117
      %p119 = scmp.ne.s32.totalorder %s107, %s108
      %p120 = scmp.eq.s32.totalorder %s35, 1
      %p121 = por %p119, %p120
      %p123 = scmp.ne.s32.totalorder %s108, %s122
      %p124 = scmp.eq.s32.totalorder %s35, 0
      %p125 = por %p123, %p124
      %s127 = sadd.s32 %s126, 1
      %p130 = scmp.eq.s32.totalorder %s29, 1
      %p131 = scmp.ne.s32.totalorder %s126, %s128
      %p132 = scmp.eq.s32.totalorder %s29, 0
      %p133 = por %p131, %p132
      %p134 = scmp.ne.s32.totalorder %s126, %s128
      %p135 = scmp.eq.s32.totalorder %s34, 1
      %p136 = por %p134, %p135
      %p137 = scmp.ne.s32.totalorder %s128, %s129
      %p138 = scmp.eq.s32.totalorder %s34, 0
      %p139 = por %p137, %p138
      %p140 = scmp.ne.s32.totalorder %s128, %s129
      %p141 = scmp.eq.s32.totalorder %s35, 1
      %p142 = por %p140, %p141
      %p144 = scmp.ne.s32.totalorder %s129, %s143
      %p145 = scmp.eq.s32.totalorder %s35, 0
      %p146 = por %p144, %p145
      %s148 = sadd.s32 %s147, 1
      %p151 = scmp.eq.s32.totalorder %s29, 1
      %p152 = scmp.ne.s32.totalorder %s147, %s149
      %p153 = scmp.eq.s32.totalorder %s29, 0
      %p154 = por %p152, %p153
      %p155 = scmp.ne.s32.totalorder %s147, %s149
      %p156 = scmp.eq.s32.totalorder %s34, 1
      %p157 = por %p155, %p156
      %p158 = scmp.ne.s32.totalorder %s149, %s150
      %p159 = scmp.eq.s32.totalorder %s34, 0
      %p160 = por %p158, %p159
      %p161 = scmp.ne.s32.totalorder %s149, %s150
      %p162 = scmp.eq.s32.totalorder %s35, 1
      %p163 = por %p161, %p162
      %p165 = scmp.ne.s32.totalorder %s150, %s164
      %p166 = scmp.eq.s32.totalorder %s35, 0
      %p167 = por %p165, %p166
      %s169 = sadd.s32 %s168, 1
      %p172 = scmp.eq.s32.totalorder %s29, 1
      %p173 = scmp.ne.s32.totalorder %s168, %s170
      %p174 = scmp.eq.s32.totalorder %s29, 0
      %p175 = por %p173, %p174
      %p176 = scmp.ne.s32.totalorder %s168, %s170
      %p177 = scmp.eq.s32.totalorder %s34, 1
      %p178 = por %p176, %p177
      %p179 = scmp.ne.s32.totalorder %s170, %s171
      %p180 = scmp.eq.s32.totalorder %s34, 0
      %p181 = por %p179, %p180
      %p182 = scmp.ne.s32.totalorder %s170, %s171
      %p183 = scmp.eq.s32.totalorder %s35, 1
      %p184 = por %p182, %p183
      %p186 = scmp.ne.s32.totalorder %s171, %s185
      %p187 = scmp.eq.s32.totalorder %s35, 0
      %p188 = por %p186, %p187
      %s190 = sadd.s32 %s189, 1
      %p193 = scmp.eq.s32.totalorder %s29, 1
      %p194 = scmp.ne.s32.totalorder %s189, %s191
      %p195 = scmp.eq.s32.totalorder %s29, 0
      %p196 = por %p194, %p195
      %p197 = scmp.ne.s32.totalorder %s189, %s191
      %p198 = scmp.eq.s32.totalorder %s34, 1
      %p199 = por %p197, %p198
      %p200 = scmp.ne.s32.totalorder %s191, %s192
      %p201 = scmp.eq.s32.totalorder %s34, 0
      %p202 = por %p200, %p201
      %p203 = scmp.ne.s32.totalorder %s191, %s192
      %p204 = scmp.eq.s32.totalorder %s35, 1
      %p205 = por %p203, %p204
      %p207 = scmp.ne.s32.totalorder %s192, %s206
      %p208 = scmp.eq.s32.totalorder %s35, 0
      %p209 = por %p207, %p208
      %s211 = sadd.s32 %s210, 1
      %p214 = scmp.eq.s32.totalorder %s29, 1
      %p215 = scmp.ne.s32.totalorder %s210, %s212
      %p216 = scmp.eq.s32.totalorder %s29, 0
      %p217 = por %p215, %p216
      %p218 = scmp.ne.s32.totalorder %s210, %s212
      %p219 = scmp.eq.s32.totalorder %s34, 1
      %p220 = por %p218, %p219
      %p221 = scmp.ne.s32.totalorder %s212, %s213
      %p222 = scmp.eq.s32.totalorder %s34, 0
      %p223 = por %p221, %p222
      %p224 = scmp.ne.s32.totalorder %s212, %s213
      %p225 = scmp.eq.s32.totalorder %s35, 1
      %p226 = por %p224, %p225
      %p228 = scmp.ne.s32.totalorder %s213, %s227
      %p229 = scmp.eq.s32.totalorder %s35, 0
      %p230 = por %p228, %p229
      %s232 = sadd.s32 %s231, 1
      %p235 = scmp.eq.s32.totalorder %s29, 1
      %p236 = scmp.ne.s32.totalorder %s231, %s233
      %p237 = scmp.eq.s32.totalorder %s29, 0
      %p238 = por %p236, %p237
      %p239 = scmp.ne.s32.totalorder %s231, %s233
      %p240 = scmp.eq.s32.totalorder %s34, 1
      %p241 = por %p239, %p240
      %p242 = scmp.ne.s32.totalorder %s233, %s234
      %p243 = scmp.eq.s32.totalorder %s34, 0
      %p244 = por %p242, %p243
      %p245 = scmp.ne.s32.totalorder %s233, %s234
      %p246 = scmp.eq.s32.totalorder %s35, 1
      %p247 = por %p245, %p246
      %p249 = scmp.ne.s32.totalorder %s234, %s248
      %p250 = scmp.eq.s32.totalorder %s35, 0
      %p251 = por %p249, %p250
      %s253 = sadd.s32 %s252, 1
      %p256 = scmp.eq.s32.totalorder %s29, 1
      %p257 = scmp.ne.s32.totalorder %s252, %s254
      %p258 = scmp.eq.s32.totalorder %s29, 0
      %p259 = por %p257, %p258
      %p260 = scmp.ne.s32.totalorder %s252, %s254
      %p261 = scmp.eq.s32.totalorder %s34, 1
      %p262 = por %p260, %p261
      %p263 = scmp.ne.s32.totalorder %s254, %s255
      %p264 = scmp.eq.s32.totalorder %s34, 0
      %p265 = por %p263, %p264
      %p266 = scmp.ne.s32.totalorder %s254, %s255
      %p267 = scmp.eq.s32.totalorder %s35, 1
      %p268 = por %p266, %p267
      %p270 = scmp.ne.s32.totalorder %s255, %s269
      %p271 = scmp.eq.s32.totalorder %s35, 0
      %p272 = por %p270, %p271
      %s274 = sadd.s32 %s273, 1
      %p277 = scmp.eq.s32.totalorder %s29, 1
      %p278 = scmp.ne.s32.totalorder %s273, %s275
      %p279 = scmp.eq.s32.totalorder %s29, 0
      %p280 = por %p278, %p279
      %p281 = scmp.ne.s32.totalorder %s273, %s275
      %p282 = scmp.eq.s32.totalorder %s34, 1
      %p283 = por %p281, %p282
      %p284 = scmp.ne.s32.totalorder %s275, %s276
      %p285 = scmp.eq.s32.totalorder %s34, 0
      %p286 = por %p284, %p285
      %p287 = scmp.ne.s32.totalorder %s275, %s276
      %p288 = scmp.eq.s32.totalorder %s35, 1
      %p289 = por %p287, %p288
      %p291 = scmp.ne.s32.totalorder %s276, %s290
      %p292 = scmp.eq.s32.totalorder %s35, 0
      %p293 = por %p291, %p292
      %s295 = sadd.s32 %s294, 1
      %p298 = scmp.eq.s32.totalorder %s29, 1
      %p299 = scmp.ne.s32.totalorder %s294, %s296
      %p300 = scmp.eq.s32.totalorder %s29, 0
      %p301 = por %p299, %p300
      %p302 = scmp.ne.s32.totalorder %s294, %s296
      %p303 = scmp.eq.s32.totalorder %s34, 1
      %p304 = por %p302, %p303
      %p305 = scmp.ne.s32.totalorder %s296, %s297
      %p306 = scmp.eq.s32.totalorder %s34, 0
      %p307 = por %p305, %p306
      %p308 = scmp.ne.s32.totalorder %s296, %s297
      %p309 = scmp.eq.s32.totalorder %s35, 1
      %p310 = por %p308, %p309
      %p312 = scmp.ne.s32.totalorder %s297, %s311
      %p313 = scmp.eq.s32.totalorder %s35, 0
      %p314 = por %p312, %p313
      %s316 = sadd.s32 %s315, 1
      %p319 = scmp.eq.s32.totalorder %s29, 1
      %p320 = scmp.ne.s32.totalorder %s315, %s317
      %p321 = scmp.eq.s32.totalorder %s29, 0
      %p322 = por %p320, %p321
      %p323 = scmp.ne.s32.totalorder %s315, %s317
      %p324 = scmp.eq.s32.totalorder %s34, 1
      %p325 = por %p323, %p324
      %p326 = scmp.ne.s32.totalorder %s317, %s318
      %p327 = scmp.eq.s32.totalorder %s34, 0
      %p328 = por %p326, %p327
      %p329 = scmp.ne.s32.totalorder %s317, %s318
      %p330 = scmp.eq.s32.totalorder %s35, 1
      %p331 = por %p329, %p330
      %p333 = scmp.ne.s32.totalorder %s318, %s332
      %p334 = scmp.eq.s32.totalorder %s35, 0
      %p335 = por %p333, %p334
      %s337 = sadd.s32 %s336, 1
      %p340 = scmp.eq.s32.totalorder %s29, 1
      %p341 = scmp.ne.s32.totalorder %s336, %s338
      %p342 = scmp.eq.s32.totalorder %s29, 0
      %p343 = por %p341, %p342
      %p344 = scmp.ne.s32.totalorder %s336, %s338
      %p345 = scmp.eq.s32.totalorder %s34, 1
      %p346 = por %p344, %p345
      %p347 = scmp.ne.s32.totalorder %s338, %s339
      %p348 = scmp.eq.s32.totalorder %s34, 0
      %p349 = por %p347, %p348
      %p350 = scmp.ne.s32.totalorder %s338, %s339
      %p351 = scmp.eq.s32.totalorder %s35, 1
      %p352 = por %p350, %p351
      %p354 = scmp.ne.s32.totalorder %s339, %s353
      %p355 = scmp.eq.s32.totalorder %s35, 0
      %p356 = por %p354, %p355
      %s357 = ssub.s32 %s29, %s36
      %p358 = scmp.eq.s32.totalorder %s357, 0
      %s360 = sadd.s32 %s359, 1
      %s361 = scalar_select %p358, %s359, %s360
      %p364 = pneg %p358
      %p365 = scmp.eq.s32.totalorder %s29, 1
      %p366 = por %p364, %p365
      %p367 = scmp.ne.s32.totalorder %s359, %s362
      %p368 = scmp.eq.s32.totalorder %s29, 0
      %p369 = por %p367, %p368
      %p370 = scmp.ne.s32.totalorder %s359, %s362
      %p371 = scmp.eq.s32.totalorder %s34, 1
      %p372 = por %p370, %p371
      %p373 = scmp.ne.s32.totalorder %s362, %s363
      %p374 = scmp.eq.s32.totalorder %s34, 0
      %p375 = por %p373, %p374
      %p376 = scmp.ne.s32.totalorder %s362, %s363
      %p377 = scmp.eq.s32.totalorder %s35, 1
      %p378 = por %p376, %p377
      %p380 = scmp.ne.s32.totalorder %s363, %s379
      %p381 = scmp.eq.s32.totalorder %s35, 0
      %p382 = por %p380, %p381
      %p383 = scmp.le.s32.totalorder 1, %s29
      %p384 = scmp.lt.s32.totalorder %s29, 3
      %p385 = pnand %p383, %p384
      %p386 = pneg %p385
      // Predicated region
      $region9: #{tpu_custom_call.1} parent=5 // pred_check
        _
      $region10: #{tpu_custom_call.1} parent=5 // pred_check_branch
        %388 = sbr.rel (%p385) target = $region12
      $region11: #{tpu_custom_call.1} parent=5 // pred_region
        %s389 = ssub.s32 %s29, 1
        // Predicated region
        $region13: #{tpu_custom_call.1} parent=11 // pred_check
          %p390 = pneg %p76
        $region14: #{tpu_custom_call.1} parent=11 // pred_check_branch
          %392 = sbr.rel (%p390) target = $region16
        $region15: #{tpu_custom_call.1} parent=11 // pred_region
          %394 = vsyncadd [#allocation6], 0
          %s395 = sshll.u32 %s1, 4
          %s396 = int_to_ptr.hbm [resolvable:$true] %s395
          %s397 = sshll.u32 [#allocation5], 4
          %s398 = int_to_ptr.vmem [resolvable:$true] %s397
          %403 = dma.hbm_to_vmem [thread:$0]  %s396, 1024, %s398, [#allocation6], 64, 64, 4
        $region16: #{tpu_custom_call.1} parent=11 // pred_fallthru
          _
        // Predicated region
        $region17: #{tpu_custom_call.1} parent=11 // pred_check
          %p404 = pneg %p97
        $region18: #{tpu_custom_call.1} parent=11 // pred_check_branch
          %406 = sbr.rel (%p404) target = $region20
        $region19: #{tpu_custom_call.1} parent=11 // pred_region
          _
        $region20: #{tpu_custom_call.1} parent=11 // pred_fallthru
          _
        // Predicated region
        $region21: #{tpu_custom_call.1} parent=11 // pred_check
          %p407 = pneg %p118
        $region22: #{tpu_custom_call.1} parent=11 // pred_check_branch
          %409 = sbr.rel (%p407) target = $region24
        $region23: #{tpu_custom_call.1} parent=11 // pred_region
          _
        $region24: #{tpu_custom_call.1} parent=11 // pred_fallthru
          _
        // Predicated region
        $region25: #{tpu_custom_call.1} parent=11 // pred_check
          %p410 = pneg %p139
        $region26: #{tpu_custom_call.1} parent=11 // pred_check_branch
          %412 = sbr.rel (%p410) target = $region28
        $region27: #{tpu_custom_call.1} parent=11 // pred_region
          _
        $region28: #{tpu_custom_call.1} parent=11 // pred_fallthru
          _
        // Predicated region
        $region29: #{tpu_custom_call.1} parent=11 // pred_check
          %p413 = pneg %p160
        $region30: #{tpu_custom_call.1} parent=11 // pred_check_branch
          %415 = sbr.rel (%p413) target = $region32
        $region31: #{tpu_custom_call.1} parent=11 // pred_region
          %417 = vsyncadd [#allocation6], 0
          %s418 = sshll.u32 %s5, 4
          %s419 = int_to_ptr.hbm [resolvable:$true] %s418
          %s420 = sshll.u32 [#allocation7], 4
          %s421 = int_to_ptr.vmem [resolvable:$true] %s420
          %426 = dma.hbm_to_vmem [thread:$0]  %s419, 1024, %s421, [#allocation6], 64, 64, 4
        $region32: #{tpu_custom_call.1} parent=11 // pred_fallthru
          _
        // Predicated region
        $region33: #{tpu_custom_call.1} parent=11 // pred_check
          %p427 = pneg %p181
        $region34: #{tpu_custom_call.1} parent=11 // pred_check_branch
          %429 = sbr.rel (%p427) target = $region36
        $region35: #{tpu_custom_call.1} parent=11 // pred_region
          _
        $region36: #{tpu_custom_call.1} parent=11 // pred_fallthru
          _
        // Predicated region
        $region37: #{tpu_custom_call.1} parent=11 // pred_check
          %p430 = pneg %p202
        $region38: #{tpu_custom_call.1} parent=11 // pred_check_branch
          %432 = sbr.rel (%p430) target = $region40
        $region39: #{tpu_custom_call.1} parent=11 // pred_region
          _
        $region40: #{tpu_custom_call.1} parent=11 // pred_fallthru
          _
        // Predicated region
        $region41: #{tpu_custom_call.1} parent=11 // pred_check
          %p433 = pneg %p223
        $region42: #{tpu_custom_call.1} parent=11 // pred_check_branch
          %435 = sbr.rel (%p433) target = $region44
        $region43: #{tpu_custom_call.1} parent=11 // pred_region
          _
        $region44: #{tpu_custom_call.1} parent=11 // pred_fallthru
          _
        // Predicated region
        $region45: #{tpu_custom_call.1} parent=11 // pred_check
          %p436 = pneg %p244
        $region46: #{tpu_custom_call.1} parent=11 // pred_check_branch
          %438 = sbr.rel (%p436) target = $region48
        $region47: #{tpu_custom_call.1} parent=11 // pred_region
          %440 = vsyncadd [#allocation9], 0
          %s441 = sshll.u32 %s9, 4
          %s442 = int_to_ptr.hbm [resolvable:$true] %s441
          %s443 = sshll.u32 [#allocation8], 4
          %s444 = int_to_ptr.vmem [resolvable:$true] %s443
          %449 = dma.hbm_to_vmem [thread:$0]  %s442, 1024, %s444, [#allocation9], 64, 64, 4
        $region48: #{tpu_custom_call.1} parent=11 // pred_fallthru
          _
        // Predicated region
        $region49: #{tpu_custom_call.1} parent=11 // pred_check
          %p450 = pneg %p265
        $region50: #{tpu_custom_call.1} parent=11 // pred_check_branch
          %452 = sbr.rel (%p450) target = $region52
        $region51: #{tpu_custom_call.1} parent=11 // pred_region
          _
        $region52: #{tpu_custom_call.1} parent=11 // pred_fallthru
          _
        // Predicated region
        $region53: #{tpu_custom_call.1} parent=11 // pred_check
          %p453 = pneg %p286
        $region54: #{tpu_custom_call.1} parent=11 // pred_check_branch
          %455 = sbr.rel (%p453) target = $region56
        $region55: #{tpu_custom_call.1} parent=11 // pred_region
          _
        $region56: #{tpu_custom_call.1} parent=11 // pred_fallthru
          _
        // Predicated region
        $region57: #{tpu_custom_call.1} parent=11 // pred_check
          %p456 = pneg %p307
        $region58: #{tpu_custom_call.1} parent=11 // pred_check_branch
          %458 = sbr.rel (%p456) target = $region60
        $region59: #{tpu_custom_call.1} parent=11 // pred_region
          _
        $region60: #{tpu_custom_call.1} parent=11 // pred_fallthru
          _
        // Predicated region
        $region61: #{tpu_custom_call.1} parent=11 // pred_check
          %p459 = pneg %p328
        $region62: #{tpu_custom_call.1} parent=11 // pred_check_branch
          %461 = sbr.rel (%p459) target = $region64
        $region63: #{tpu_custom_call.1} parent=11 // pred_region
          %463 = vsyncadd [#allocation9], 0
          %s464 = sshll.u32 %s13, 4
          %s465 = int_to_ptr.hbm [resolvable:$true] %s464
          %s466 = sshll.u32 [#allocation10], 4
          %s467 = int_to_ptr.vmem [resolvable:$true] %s466
          %472 = dma.hbm_to_vmem [thread:$0]  %s465, 1024, %s467, [#allocation9], 64, 64, 4
        $region64: #{tpu_custom_call.1} parent=11 // pred_fallthru
          _
        // Predicated region
        $region65: #{tpu_custom_call.1} parent=11 // pred_check
          %p473 = pneg %p349
        $region66: #{tpu_custom_call.1} parent=11 // pred_check_branch
          %475 = sbr.rel (%p473) target = $region68
        $region67: #{tpu_custom_call.1} parent=11 // pred_region
          _
        $region68: #{tpu_custom_call.1} parent=11 // pred_fallthru
          _
      $region12: #{tpu_custom_call.1} parent=5 // pred_fallthru
        _
      %p476 = scmp.lt.s32.totalorder %s29, 2
      // Predicated region
      $region69: #{tpu_custom_call.1} parent=5 // pred_check
        %p477 = pneg %p476
      $region70: #{tpu_custom_call.1} parent=5 // pred_check_branch
        %479 = sbr.rel (%p477) target = $region72
      $region71: #{tpu_custom_call.1} parent=5 // pred_region
        // Predicated region
        $region73: #{tpu_custom_call.1} parent=71 // pred_check
          %p480 = pneg %p49
        $region74: #{tpu_custom_call.1} parent=71 // pred_check_branch
          %482 = sbr.rel (%p480) target = $region76
        $region75: #{tpu_custom_call.1} parent=71 // pred_region
          %s483 = sand.u32 %s39, 1
          %s484 = scalar_lea.sflag [#allocation3], %s483
          %s485 = sand.u32 %s39, 1
          %s486 = smul.addr %s485, 128
          %s487 = scalar_lea.vmem [#allocation2], %s486
          %s488 = smul.u32 16, %s29
          %490 = vsyncadd %s484, 0
          %s491 = smul.addr %s488, 8
          %s492 = scalar_lea.hbm %s0, %s491
          %s493 = sshll.u32 %s492, 4
          %s494 = int_to_ptr.hbm [resolvable:$true] %s493
          %s495 = sshll.u32 %s487, 4
          %s496 = int_to_ptr.vmem [resolvable:$true] %s495
          %501 = dma.hbm_to_vmem [thread:$0]  %s494, 2048, %s496, %s484, 128, 128, 8
        $region76: #{tpu_custom_call.1} parent=71 // pred_fallthru
          _
      $region72: #{tpu_custom_call.1} parent=5 // pred_fallthru
        _
      %p502 = scmp.le.s32.totalorder 1, %s29
      %p503 = scmp.lt.s32.totalorder %s29, 3
      %p504 = pnand %p502, %p503
      %p505 = pneg %p504
      // Predicated region
      $region77: #{tpu_custom_call.1} parent=5 // pred_check
        _
      $region78: #{tpu_custom_call.1} parent=5 // pred_check_branch
        %507 = sbr.rel (%p504) target = $region80
      $region79: #{tpu_custom_call.1} parent=5 // pred_region
        %s508 = ssub.s32 %s29, 1
        %s509 = sand.u32 %s42, 1
        %s510 = scalar_lea.sflag [#allocation3], %s509
        %s511 = sand.u32 %s42, 1
        %s512 = smul.addr %s511, 128
        %s513 = scalar_lea.vmem [#allocation2], %s512
        // Predicated region
        $region81: #{tpu_custom_call.1} parent=79 // pred_check
          %p514 = pneg %p55
        $region82: #{tpu_custom_call.1} parent=79 // pred_check_branch
          %516 = sbr.rel (%p514) target = $region84
        $region83: #{tpu_custom_call.1} parent=79 // pred_region
          %518 = dma.done %s510, 2048
        $region84: #{tpu_custom_call.1} parent=79 // pred_fallthru
          _
        // Predicated region
        $region85: #{tpu_custom_call.1} parent=79 // pred_check
          %p519 = pneg %p76
        $region86: #{tpu_custom_call.1} parent=79 // pred_check_branch
          %521 = sbr.rel (%p519) target = $region88
        $region87: #{tpu_custom_call.1} parent=79 // pred_region
          %523 = dma.done [#allocation6], 1024
        $region88: #{tpu_custom_call.1} parent=79 // pred_fallthru
          _
        // Predicated region
        $region89: #{tpu_custom_call.1} parent=79 // pred_check
          %p524 = pneg %p160
        $region90: #{tpu_custom_call.1} parent=79 // pred_check_branch
          %526 = sbr.rel (%p524) target = $region92
        $region91: #{tpu_custom_call.1} parent=79 // pred_region
          %528 = dma.done [#allocation6], 1024
        $region92: #{tpu_custom_call.1} parent=79 // pred_fallthru
          _
        // Predicated region
        $region93: #{tpu_custom_call.1} parent=79 // pred_check
          %p529 = pneg %p244
        $region94: #{tpu_custom_call.1} parent=79 // pred_check_branch
          %531 = sbr.rel (%p529) target = $region96
        $region95: #{tpu_custom_call.1} parent=79 // pred_region
          %533 = dma.done [#allocation9], 1024
        $region96: #{tpu_custom_call.1} parent=79 // pred_fallthru
          _
        // Predicated region
        $region97: #{tpu_custom_call.1} parent=79 // pred_check
          %p534 = pneg %p328
        $region98: #{tpu_custom_call.1} parent=79 // pred_check_branch
          %536 = sbr.rel (%p534) target = $region100
        $region99: #{tpu_custom_call.1} parent=79 // pred_region
          %538 = dma.done [#allocation9], 1024
        $region100: #{tpu_custom_call.1} parent=79 // pred_fallthru
          _
        %s539 = sand.u32 %s42, 1
        %s540 = scalar_lea.sflag [#allocation3], %s539
        %s541 = sand.u32 %s42, 1
        %s542 = smul.addr %s541, 128
        %s543 = scalar_lea.vmem [#allocation2], %s542
        %p544 = pneg %p55
        %p545 = pneg %p52
        %p546 = pneg %p76
        %p547 = pneg %p73
        %p548 = pneg %p97
        %p549 = pneg %p94
        %p550 = pneg %p118
        %p551 = pneg %p115
        %p552 = pneg %p139
        %p553 = pneg %p136
        %p554 = pneg %p160
        %p555 = pneg %p157
        %p556 = pneg %p181
        %p557 = pneg %p178
        %p558 = pneg %p202
        %p559 = pneg %p199
        %p560 = pneg %p223
        %p561 = pneg %p220
        %p562 = pneg %p244
        %p563 = pneg %p241
        %p564 = pneg %p265
        %p565 = pneg %p262
        %p566 = pneg %p286
        %p567 = pneg %p283
        %p568 = pneg %p307
        %p569 = pneg %p304
        %p570 = pneg %p328
        %p571 = pneg %p325
        %p572 = pneg %p349
        %p573 = pneg %p346
        %p574 = pneg %p375
        %p575 = pneg %p372
        %s576 = sand.u32 %s362, 1
        %s577 = scalar_lea.sflag [#allocation4], %s576
        %s578 = sand.u32 %s362, 1
        %s579 = smul.addr %s578, 128
        %s580 = scalar_lea.vmem [#allocation11], %s579
        %s581 = smul.u32 16, %s34
        %s582 = smul.u32 16, %s34
        %v583 = vld [vmem:[%s513] sm:$0xff]
        %v584 = vld [vmem:[%s513 + $0x8] sm:$0xff]
        %v585 = vld [vmem:[%s513 + $0x10] sm:$0xff]
        %v586 = vld [vmem:[%s513 + $0x18] sm:$0xff]
        %v587 = vld [vmem:[%s513 + $0x20] sm:$0xff]
        %v588 = vld [vmem:[%s513 + $0x28] sm:$0xff]
        %v589 = vld [vmem:[%s513 + $0x30] sm:$0xff]
        %v590 = vld [vmem:[%s513 + $0x38] sm:$0xff]
        %v591 = vld [vmem:[%s513 + $0x40] sm:$0xff]
        %v592 = vld [vmem:[%s513 + $0x48] sm:$0xff]
        %v593 = vld [vmem:[%s513 + $0x50] sm:$0xff]
        %v594 = vld [vmem:[%s513 + $0x58] sm:$0xff]
        %v595 = vld [vmem:[%s513 + $0x60] sm:$0xff]
        %v596 = vld [vmem:[%s513 + $0x68] sm:$0xff]
        %v597 = vld [vmem:[%s513 + $0x70] sm:$0xff]
        %v598 = vld [vmem:[%s513 + $0x78] sm:$0xff]
        %v599 = vpack.c.bf16 %v584, %v583
        %v600 = vpack.c.bf16 %v586, %v585
        %v601 = vpack.c.bf16 %v588, %v587
        %v602 = vpack.c.bf16 %v590, %v589
        %v603 = vpack.c.bf16 %v592, %v591
        %v604 = vpack.c.bf16 %v594, %v593
        %v605 = vpack.c.bf16 %v596, %v595
        %v606 = vpack.c.bf16 %v598, %v597
        %v607 = vld [vmem:[#allocation5] sm:$0xf]
        %v608 = vld [vmem:[#allocation5 + $0x4] sm:$0xf]
        %v609 = vld [vmem:[#allocation5 + $0x8] sm:$0xf]
        %v610 = vld [vmem:[#allocation5 + $0xc] sm:$0xf]
        %v611 = vld [vmem:[#allocation5 + $0x10] sm:$0xf]
        %v612 = vld [vmem:[#allocation5 + $0x14] sm:$0xf]
        %v613 = vld [vmem:[#allocation5 + $0x18] sm:$0xf]
        %v614 = vld [vmem:[#allocation5 + $0x1c] sm:$0xf]
        %v615 = vld [vmem:[#allocation5 + $0x20] sm:$0xf]
        %v616 = vld [vmem:[#allocation5 + $0x24] sm:$0xf]
        %v617 = vld [vmem:[#allocation5 + $0x28] sm:$0xf]
        %v618 = vld [vmem:[#allocation5 + $0x2c] sm:$0xf]
        %v619 = vld [vmem:[#allocation5 + $0x30] sm:$0xf]
        %v620 = vld [vmem:[#allocation5 + $0x34] sm:$0xf]
        %v621 = vld [vmem:[#allocation5 + $0x38] sm:$0xf]
        %v622 = vld [vmem:[#allocation5 + $0x3c] sm:$0xf]
        %v623 = vld [vmem:[%s2] sm:$0x1]
        %v625 = vperm.slane %v623, 0
        %v643 = vunpack.c.l.b16 %v607
        %v644 = vunpack.c.l.b16 %v608
        %v645 = vunpack.c.l.b16 %v609
        %v646 = vunpack.c.l.b16 %v610
        %v647 = vunpack.c.l.b16 %v611
        %v648 = vunpack.c.l.b16 %v612
        %v649 = vunpack.c.l.b16 %v613
        %v650 = vunpack.c.l.b16 %v614
        %v651 = vunpack.c.l.b16 %v615
        %v652 = vunpack.c.l.b16 %v616
        %v653 = vunpack.c.l.b16 %v617
        %v654 = vunpack.c.l.b16 %v618
        %v655 = vunpack.c.l.b16 %v619
        %v656 = vunpack.c.l.b16 %v620
        %v657 = vunpack.c.l.b16 %v621
        %v658 = vunpack.c.l.b16 %v622
        %v659 = vpack.c.b16 %v644, %v643
        %v660 = vpack.c.b16 %v646, %v645
        %v661 = vpack.c.b16 %v648, %v647
        %v662 = vpack.c.b16 %v650, %v649
        %v663 = vpack.c.b16 %v652, %v651
        %v664 = vpack.c.b16 %v654, %v653
        %v665 = vpack.c.b16 %v656, %v655
        %v666 = vpack.c.b16 %v658, %v657
        %675 = vmatpush.bf16.msra.mxu0 %v666
        %676 = vmatpush.bf16.msra.mxu0 %v665
        %677 = vmatpush.bf16.msra.mxu0 %v664
        %678 = vmatpush.bf16.msra.mxu0 %v663
        %679 = vmatpush.bf16.msra.mxu0 %v662
        %680 = vmatpush.bf16.msra.mxu0 %v661
        %681 = vmatpush.bf16.msra.mxu0 %v660
        %682 = vmatpush.bf16.msra.mxu0 %v659
        %683 = vmatmul.bf16.gmra.mxu0 %v599
        %v684 = vpop.f32.mrf.mxu0
        %v685 = vadd.f32 %v625, %v684
        %v686 = vpop.f32.mrf.mxu0
        %v687 = vadd.f32 %v625, %v686
        %688 = vmatmul.bf16.gmra.mxu0 %v600
        %v689 = vpop.f32.mrf.mxu0
        %v690 = vadd.f32 %v625, %v689
        %v691 = vpop.f32.mrf.mxu0
        %v692 = vadd.f32 %v625, %v691
        %693 = vmatmul.bf16.gmra.mxu0 %v601
        %v694 = vpop.f32.mrf.mxu0
        %v695 = vadd.f32 %v625, %v694
        %v696 = vpop.f32.mrf.mxu0
        %v697 = vadd.f32 %v625, %v696
        %698 = vmatmul.bf16.gmra.mxu0 %v602
        %v699 = vpop.f32.mrf.mxu0
        %v700 = vadd.f32 %v625, %v699
        %v701 = vpop.f32.mrf.mxu0
        %v702 = vadd.f32 %v625, %v701
        %703 = vmatmul.bf16.gmra.mxu0 %v603
        %v704 = vpop.f32.mrf.mxu0
        %v705 = vadd.f32 %v625, %v704
        %v706 = vpop.f32.mrf.mxu0
        %v707 = vadd.f32 %v625, %v706
        %708 = vmatmul.bf16.gmra.mxu0 %v604
        %v709 = vpop.f32.mrf.mxu0
        %v710 = vadd.f32 %v625, %v709
        %v711 = vpop.f32.mrf.mxu0
        %v712 = vadd.f32 %v625, %v711
        %713 = vmatmul.bf16.gmra.mxu0 %v605
        %v714 = vpop.f32.mrf.mxu0
        %v715 = vadd.f32 %v625, %v714
        %v716 = vpop.f32.mrf.mxu0
        %v717 = vadd.f32 %v625, %v716
        %718 = vmatmul.bf16.gmra.mxu0 %v606
        %v719 = vpop.f32.mrf.mxu0
        %v720 = vadd.f32 %v625, %v719
        %v721 = vpop.f32.mrf.mxu0
        %v722 = vadd.f32 %v625, %v721
        %723 = vdwg.mxu0
        %724 = vadd.xlane.f32.xlu0 %v685
        %v725 = vpop.xlane.xlu0 %724
        %726 = vadd.xlane.f32.xlu0 %v687
        %v727 = vpop.xlane.xlu0 %726
        %728 = vadd.xlane.f32.xlu0 %v690
        %v729 = vpop.xlane.xlu0 %728
        %730 = vadd.xlane.f32.xlu0 %v692
        %v731 = vpop.xlane.xlu0 %730
        %732 = vadd.xlane.f32.xlu0 %v695
        %v733 = vpop.xlane.xlu0 %732
        %734 = vadd.xlane.f32.xlu0 %v697
        %v735 = vpop.xlane.xlu0 %734
        %736 = vadd.xlane.f32.xlu0 %v700
        %v737 = vpop.xlane.xlu0 %736
        %738 = vadd.xlane.f32.xlu0 %v702
        %v739 = vpop.xlane.xlu0 %738
        %740 = vadd.xlane.f32.xlu0 %v705
        %v741 = vpop.xlane.xlu0 %740
        %742 = vadd.xlane.f32.xlu0 %v707
        %v743 = vpop.xlane.xlu0 %742
        %744 = vadd.xlane.f32.xlu0 %v710
        %v745 = vpop.xlane.xlu0 %744
        %746 = vadd.xlane.f32.xlu0 %v712
        %v747 = vpop.xlane.xlu0 %746
        %748 = vadd.xlane.f32.xlu0 %v715
        %v749 = vpop.xlane.xlu0 %748
        %750 = vadd.xlane.f32.xlu0 %v717
        %v751 = vpop.xlane.xlu0 %750
        %752 = vadd.xlane.f32.xlu0 %v720
        %v753 = vpop.xlane.xlu0 %752
        %754 = vadd.xlane.f32.xlu0 %v722
        %v755 = vpop.xlane.xlu0 %754
        %v756 = vmul.f32 %v685, %v685
        %v757 = vmul.f32 %v687, %v687
        %v758 = vmul.f32 %v690, %v690
        %v759 = vmul.f32 %v692, %v692
        %v760 = vmul.f32 %v695, %v695
        %v761 = vmul.f32 %v697, %v697
        %v762 = vmul.f32 %v700, %v700
        %v763 = vmul.f32 %v702, %v702
        %v764 = vmul.f32 %v705, %v705
        %v765 = vmul.f32 %v707, %v707
        %v766 = vmul.f32 %v710, %v710
        %v767 = vmul.f32 %v712, %v712
        %v768 = vmul.f32 %v715, %v715
        %v769 = vmul.f32 %v717, %v717
        %v770 = vmul.f32 %v720, %v720
        %v771 = vmul.f32 %v722, %v722
        %772 = vadd.xlane.f32.xlu0 %v756
        %v773 = vpop.xlane.xlu0 %772
        %774 = vadd.xlane.f32.xlu0 %v757
        %v775 = vpop.xlane.xlu0 %774
        %776 = vadd.xlane.f32.xlu0 %v758
        %v777 = vpop.xlane.xlu0 %776
        %778 = vadd.xlane.f32.xlu0 %v759
        %v779 = vpop.xlane.xlu0 %778
        %780 = vadd.xlane.f32.xlu0 %v760
        %v781 = vpop.xlane.xlu0 %780
        %782 = vadd.xlane.f32.xlu0 %v761
        %v783 = vpop.xlane.xlu0 %782
        %784 = vadd.xlane.f32.xlu0 %v762
        %v785 = vpop.xlane.xlu0 %784
        %786 = vadd.xlane.f32.xlu0 %v763
        %v787 = vpop.xlane.xlu0 %786
        %788 = vadd.xlane.f32.xlu0 %v764
        %v789 = vpop.xlane.xlu0 %788
        %790 = vadd.xlane.f32.xlu0 %v765
        %v791 = vpop.xlane.xlu0 %790
        %792 = vadd.xlane.f32.xlu0 %v766
        %v793 = vpop.xlane.xlu0 %792
        %794 = vadd.xlane.f32.xlu0 %v767
        %v795 = vpop.xlane.xlu0 %794
        %796 = vadd.xlane.f32.xlu0 %v768
        %v797 = vpop.xlane.xlu0 %796
        %798 = vadd.xlane.f32.xlu0 %v769
        %v799 = vpop.xlane.xlu0 %798
        %800 = vadd.xlane.f32.xlu0 %v770
        %v801 = vpop.xlane.xlu0 %800
        %802 = vadd.xlane.f32.xlu0 %v771
        %v803 = vpop.xlane.xlu0 %802
        %v804 = vmul.f32 %v725, 0.03125
        %v805 = vmul.f32 %v727, 0.03125
        %v806 = vmul.f32 %v729, 0.03125
        %v807 = vmul.f32 %v731, 0.03125
        %v808 = vmul.f32 %v733, 0.03125
        %v809 = vmul.f32 %v735, 0.03125
        %v810 = vmul.f32 %v737, 0.03125
        %v811 = vmul.f32 %v739, 0.03125
        %v812 = vmul.f32 %v741, 0.03125
        %v813 = vmul.f32 %v743, 0.03125
        %v814 = vmul.f32 %v745, 0.03125
        %v815 = vmul.f32 %v747, 0.03125
        %v816 = vmul.f32 %v749, 0.03125
        %v817 = vmul.f32 %v751, 0.03125
        %v818 = vmul.f32 %v753, 0.03125
        %v819 = vmul.f32 %v755, 0.03125
        %v820 = vmul.f32 %v773, 0.03125
        %v821 = vmul.f32 %v775, 0.03125
        %v822 = vmul.f32 %v777, 0.03125
        %v823 = vmul.f32 %v779, 0.03125
        %v824 = vmul.f32 %v781, 0.03125
        %v825 = vmul.f32 %v783, 0.03125
        %v826 = vmul.f32 %v785, 0.03125
        %v827 = vmul.f32 %v787, 0.03125
        %v828 = vmul.f32 %v789, 0.03125
        %v829 = vmul.f32 %v791, 0.03125
        %v830 = vmul.f32 %v793, 0.03125
        %v831 = vmul.f32 %v795, 0.03125
        %v832 = vmul.f32 %v797, 0.03125
        %v833 = vmul.f32 %v799, 0.03125
        %v834 = vmul.f32 %v801, 0.03125
        %v835 = vmul.f32 %v803, 0.03125
        %v836 = vmul.f32 %v804, %v804
        %v837 = vmul.f32 %v805, %v805
        %v838 = vmul.f32 %v806, %v806
        %v839 = vmul.f32 %v807, %v807
        %v840 = vmul.f32 %v808, %v808
        %v841 = vmul.f32 %v809, %v809
        %v842 = vmul.f32 %v810, %v810
        %v843 = vmul.f32 %v811, %v811
        %v844 = vmul.f32 %v812, %v812
        %v845 = vmul.f32 %v813, %v813
        %v846 = vmul.f32 %v814, %v814
        %v847 = vmul.f32 %v815, %v815
        %v848 = vmul.f32 %v816, %v816
        %v849 = vmul.f32 %v817, %v817
        %v850 = vmul.f32 %v818, %v818
        %v851 = vmul.f32 %v819, %v819
        %v852 = vsub.f32 %v820, %v836
        %v853 = vsub.f32 %v821, %v837
        %v854 = vsub.f32 %v822, %v838
        %v855 = vsub.f32 %v823, %v839
        %v856 = vsub.f32 %v824, %v840
        %v857 = vsub.f32 %v825, %v841
        %v858 = vsub.f32 %v826, %v842
        %v859 = vsub.f32 %v827, %v843
        %v860 = vsub.f32 %v828, %v844
        %v861 = vsub.f32 %v829, %v845
        %v862 = vsub.f32 %v830, %v846
        %v863 = vsub.f32 %v831, %v847
        %v864 = vsub.f32 %v832, %v848
        %v865 = vsub.f32 %v833, %v849
        %v866 = vsub.f32 %v834, %v850
        %v867 = vsub.f32 %v835, %v851
        %v868 = vsub.f32 %v685, %v804
        %v869 = vsub.f32 %v687, %v805
        %v870 = vsub.f32 %v690, %v806
        %v871 = vsub.f32 %v692, %v807
        %v872 = vsub.f32 %v695, %v808
        %v873 = vsub.f32 %v697, %v809
        %v874 = vsub.f32 %v700, %v810
        %v875 = vsub.f32 %v702, %v811
        %v876 = vsub.f32 %v705, %v812
        %v877 = vsub.f32 %v707, %v813
        %v878 = vsub.f32 %v710, %v814
        %v879 = vsub.f32 %v712, %v815
        %v880 = vsub.f32 %v715, %v816
        %v881 = vsub.f32 %v717, %v817
        %v882 = vsub.f32 %v720, %v818
        %v883 = vsub.f32 %v722, %v819
        %v884 = vadd.f32 %v852, 1e-05
        %v885 = vadd.f32 %v853, 1e-05
        %v886 = vadd.f32 %v854, 1e-05
        %v887 = vadd.f32 %v855, 1e-05
        %v888 = vadd.f32 %v856, 1e-05
        %v889 = vadd.f32 %v857, 1e-05
        %v890 = vadd.f32 %v858, 1e-05
        %v891 = vadd.f32 %v859, 1e-05
        %v892 = vadd.f32 %v860, 1e-05
        %v893 = vadd.f32 %v861, 1e-05
        %v894 = vadd.f32 %v862, 1e-05
        %v895 = vadd.f32 %v863, 1e-05
        %v896 = vadd.f32 %v864, 1e-05
        %v897 = vadd.f32 %v865, 1e-05
        %v898 = vadd.f32 %v866, 1e-05
        %v899 = vadd.f32 %v867, 1e-05
        %v900 = vrsqrt.pop %v884
        %v901 = vmul.f32 %v900, %v884
        %v902 = vmul.f32 %v901, %v900
        %v903 = vmul.f32 0.5, %v902
        %v904 = vsub.f32 1.5, %v903
        %v905 = vmul.f32 %v900, %v904
        %vm906 = vweird.f32 %v884
        %vm907 = vweird.f32 %v900
        %vm908 = vmor %vm906, %vm907
        %v909 = vsel %vm908, %v900, %v905
        %v910 = vrsqrt.pop %v885
        %v911 = vmul.f32 %v910, %v885
        %v912 = vmul.f32 %v911, %v910
        %v913 = vmul.f32 0.5, %v912
        %v914 = vsub.f32 1.5, %v913
        %v915 = vmul.f32 %v910, %v914
        %vm916 = vweird.f32 %v885
        %vm917 = vweird.f32 %v910
        %vm918 = vmor %vm916, %vm917
        %v919 = vsel %vm918, %v910, %v915
        %v920 = vrsqrt.pop %v886
        %v921 = vmul.f32 %v920, %v886
        %v922 = vmul.f32 %v921, %v920
        %v923 = vmul.f32 0.5, %v922
        %v924 = vsub.f32 1.5, %v923
        %v925 = vmul.f32 %v920, %v924
        %vm926 = vweird.f32 %v886
        %vm927 = vweird.f32 %v920
        %vm928 = vmor %vm926, %vm927
        %v929 = vsel %vm928, %v920, %v925
        %v930 = vrsqrt.pop %v887
        %v931 = vmul.f32 %v930, %v887
        %v932 = vmul.f32 %v931, %v930
        %v933 = vmul.f32 0.5, %v932
        %v934 = vsub.f32 1.5, %v933
        %v935 = vmul.f32 %v930, %v934
        %vm936 = vweird.f32 %v887
        %vm937 = vweird.f32 %v930
        %vm938 = vmor %vm936, %vm937
        %v939 = vsel %vm938, %v930, %v935
        %v940 = vrsqrt.pop %v888
        %v941 = vmul.f32 %v940, %v888
        %v942 = vmul.f32 %v941, %v940
        %v943 = vmul.f32 0.5, %v942
        %v944 = vsub.f32 1.5, %v943
        %v945 = vmul.f32 %v940, %v944
        %vm946 = vweird.f32 %v888
        %vm947 = vweird.f32 %v940
        %vm948 = vmor %vm946, %vm947
        %v949 = vsel %vm948, %v940, %v945
        %v950 = vrsqrt.pop %v889
        %v951 = vmul.f32 %v950, %v889
        %v952 = vmul.f32 %v951, %v950
        %v953 = vmul.f32 0.5, %v952
        %v954 = vsub.f32 1.5, %v953
        %v955 = vmul.f32 %v950, %v954
        %vm956 = vweird.f32 %v889
        %vm957 = vweird.f32 %v950
        %vm958 = vmor %vm956, %vm957
        %v959 = vsel %vm958, %v950, %v955
        %v960 = vrsqrt.pop %v890
        %v961 = vmul.f32 %v960, %v890
        %v962 = vmul.f32 %v961, %v960
        %v963 = vmul.f32 0.5, %v962
        %v964 = vsub.f32 1.5, %v963
        %v965 = vmul.f32 %v960, %v964
        %vm966 = vweird.f32 %v890
        %vm967 = vweird.f32 %v960
        %vm968 = vmor %vm966, %vm967
        %v969 = vsel %vm968, %v960, %v965
        %v970 = vrsqrt.pop %v891
        %v971 = vmul.f32 %v970, %v891
        %v972 = vmul.f32 %v971, %v970
        %v973 = vmul.f32 0.5, %v972
        %v974 = vsub.f32 1.5, %v973
        %v975 = vmul.f32 %v970, %v974
        %vm976 = vweird.f32 %v891
        %vm977 = vweird.f32 %v970
        %vm978 = vmor %vm976, %vm977
        %v979 = vsel %vm978, %v970, %v975
        %v980 = vrsqrt.pop %v892
        %v981 = vmul.f32 %v980, %v892
        %v982 = vmul.f32 %v981, %v980
        %v983 = vmul.f32 0.5, %v982
        %v984 = vsub.f32 1.5, %v983
        %v985 = vmul.f32 %v980, %v984
        %vm986 = vweird.f32 %v892
        %vm987 = vweird.f32 %v980
        %vm988 = vmor %vm986, %vm987
        %v989 = vsel %vm988, %v980, %v985
        %v990 = vrsqrt.pop %v893
        %v991 = vmul.f32 %v990, %v893
        %v992 = vmul.f32 %v991, %v990
        %v993 = vmul.f32 0.5, %v992
        %v994 = vsub.f32 1.5, %v993
        %v995 = vmul.f32 %v990, %v994
        %vm996 = vweird.f32 %v893
        %vm997 = vweird.f32 %v990
        %vm998 = vmor %vm996, %vm997
        %v999 = vsel %vm998, %v990, %v995
        %v1000 = vrsqrt.pop %v894
        %v1001 = vmul.f32 %v1000, %v894
        %v1002 = vmul.f32 %v1001, %v1000
        %v1003 = vmul.f32 0.5, %v1002
        %v1004 = vsub.f32 1.5, %v1003
        %v1005 = vmul.f32 %v1000, %v1004
        %vm1006 = vweird.f32 %v894
        %vm1007 = vweird.f32 %v1000
        %vm1008 = vmor %vm1006, %vm1007
        %v1009 = vsel %vm1008, %v1000, %v1005
        %v1010 = vrsqrt.pop %v895
        %v1011 = vmul.f32 %v1010, %v895
        %v1012 = vmul.f32 %v1011, %v1010
        %v1013 = vmul.f32 0.5, %v1012
        %v1014 = vsub.f32 1.5, %v1013
        %v1015 = vmul.f32 %v1010, %v1014
        %vm1016 = vweird.f32 %v895
        %vm1017 = vweird.f32 %v1010
        %vm1018 = vmor %vm1016, %vm1017
        %v1019 = vsel %vm1018, %v1010, %v1015
        %v1020 = vrsqrt.pop %v896
        %v1021 = vmul.f32 %v1020, %v896
        %v1022 = vmul.f32 %v1021, %v1020
        %v1023 = vmul.f32 0.5, %v1022
        %v1024 = vsub.f32 1.5, %v1023
        %v1025 = vmul.f32 %v1020, %v1024
        %vm1026 = vweird.f32 %v896
        %vm1027 = vweird.f32 %v1020
        %vm1028 = vmor %vm1026, %vm1027
        %v1029 = vsel %vm1028, %v1020, %v1025
        %v1030 = vrsqrt.pop %v897
        %v1031 = vmul.f32 %v1030, %v897
        %v1032 = vmul.f32 %v1031, %v1030
        %v1033 = vmul.f32 0.5, %v1032
        %v1034 = vsub.f32 1.5, %v1033
        %v1035 = vmul.f32 %v1030, %v1034
        %vm1036 = vweird.f32 %v897
        %vm1037 = vweird.f32 %v1030
        %vm1038 = vmor %vm1036, %vm1037
        %v1039 = vsel %vm1038, %v1030, %v1035
        %v1040 = vrsqrt.pop %v898
        %v1041 = vmul.f32 %v1040, %v898
        %v1042 = vmul.f32 %v1041, %v1040
        %v1043 = vmul.f32 0.5, %v1042
        %v1044 = vsub.f32 1.5, %v1043
        %v1045 = vmul.f32 %v1040, %v1044
        %vm1046 = vweird.f32 %v898
        %vm1047 = vweird.f32 %v1040
        %vm1048 = vmor %vm1046, %vm1047
        %v1049 = vsel %vm1048, %v1040, %v1045
        %v1050 = vrsqrt.pop %v899
        %v1051 = vmul.f32 %v1050, %v899
        %v1052 = vmul.f32 %v1051, %v1050
        %v1053 = vmul.f32 0.5, %v1052
        %v1054 = vsub.f32 1.5, %v1053
        %v1055 = vmul.f32 %v1050, %v1054
        %vm1056 = vweird.f32 %v899
        %vm1057 = vweird.f32 %v1050
        %vm1058 = vmor %vm1056, %vm1057
        %v1059 = vsel %vm1058, %v1050, %v1055
        %v1060 = vmul.f32 %v868, %v909
        %v1061 = vmul.f32 %v869, %v919
        %v1062 = vmul.f32 %v870, %v929
        %v1063 = vmul.f32 %v871, %v939
        %v1064 = vmul.f32 %v872, %v949
        %v1065 = vmul.f32 %v873, %v959
        %v1066 = vmul.f32 %v874, %v969
        %v1067 = vmul.f32 %v875, %v979
        %v1068 = vmul.f32 %v876, %v989
        %v1069 = vmul.f32 %v877, %v999
        %v1070 = vmul.f32 %v878, %v1009
        %v1071 = vmul.f32 %v879, %v1019
        %v1072 = vmul.f32 %v880, %v1029
        %v1073 = vmul.f32 %v881, %v1039
        %v1074 = vmul.f32 %v882, %v1049
        %v1075 = vmul.f32 %v883, %v1059
        %v1076 = vld [vmem:[%s3] sm:$0x1]
        %v1078 = vperm.slane %v1076, 0
        %v1080 = vmul.f32 %v1060, %v1078
        %v1081 = vmul.f32 %v1061, %v1078
        %v1082 = vmul.f32 %v1062, %v1078
        %v1083 = vmul.f32 %v1063, %v1078
        %v1084 = vmul.f32 %v1064, %v1078
        %v1085 = vmul.f32 %v1065, %v1078
        %v1086 = vmul.f32 %v1066, %v1078
        %v1087 = vmul.f32 %v1067, %v1078
        %v1088 = vmul.f32 %v1068, %v1078
        %v1089 = vmul.f32 %v1069, %v1078
        %v1090 = vmul.f32 %v1070, %v1078
        %v1091 = vmul.f32 %v1071, %v1078
        %v1092 = vmul.f32 %v1072, %v1078
        %v1093 = vmul.f32 %v1073, %v1078
        %v1094 = vmul.f32 %v1074, %v1078
        %v1095 = vmul.f32 %v1075, %v1078
        %v1096 = vld [vmem:[%s4] sm:$0x1]
        %v1098 = vperm.slane %v1096, 0
        %v1100 = vadd.f32 %v1080, %v1098
        %v1101 = vadd.f32 %v1081, %v1098
        %v1102 = vadd.f32 %v1082, %v1098
        %v1103 = vadd.f32 %v1083, %v1098
        %v1104 = vadd.f32 %v1084, %v1098
        %v1105 = vadd.f32 %v1085, %v1098
        %v1106 = vadd.f32 %v1086, %v1098
        %v1107 = vadd.f32 %v1087, %v1098
        %v1108 = vadd.f32 %v1088, %v1098
        %v1109 = vadd.f32 %v1089, %v1098
        %v1110 = vadd.f32 %v1090, %v1098
        %v1111 = vadd.f32 %v1091, %v1098
        %v1112 = vadd.f32 %v1092, %v1098
        %v1113 = vadd.f32 %v1093, %v1098
        %v1114 = vadd.f32 %v1094, %v1098
        %v1115 = vadd.f32 %v1095, %v1098
        %v1116 = vmax.f32 %v1100, 0.0
        %v1117 = vmax.f32 %v1101, 0.0
        %v1118 = vmax.f32 %v1102, 0.0
        %v1119 = vmax.f32 %v1103, 0.0
        %v1120 = vmax.f32 %v1104, 0.0
        %v1121 = vmax.f32 %v1105, 0.0
        %v1122 = vmax.f32 %v1106, 0.0
        %v1123 = vmax.f32 %v1107, 0.0
        %v1124 = vmax.f32 %v1108, 0.0
        %v1125 = vmax.f32 %v1109, 0.0
        %v1126 = vmax.f32 %v1110, 0.0
        %v1127 = vmax.f32 %v1111, 0.0
        %v1128 = vmax.f32 %v1112, 0.0
        %v1129 = vmax.f32 %v1113, 0.0
        %v1130 = vmax.f32 %v1114, 0.0
        %v1131 = vmax.f32 %v1115, 0.0
        %v1132 = vpack.c.bf16 %v1117, %v1116
        %v1133 = vpack.c.bf16 %v1119, %v1118
        %v1134 = vpack.c.bf16 %v1121, %v1120
        %v1135 = vpack.c.bf16 %v1123, %v1122
        %v1136 = vpack.c.bf16 %v1125, %v1124
        %v1137 = vpack.c.bf16 %v1127, %v1126
        %v1138 = vpack.c.bf16 %v1129, %v1128
        %v1139 = vpack.c.bf16 %v1131, %v1130
        %v1140 = vld [vmem:[#allocation7] sm:$0xf]
        %v1141 = vld [vmem:[#allocation7 + $0x4] sm:$0xf]
        %v1142 = vld [vmem:[#allocation7 + $0x8] sm:$0xf]
        %v1143 = vld [vmem:[#allocation7 + $0xc] sm:$0xf]
        %v1144 = vld [vmem:[#allocation7 + $0x10] sm:$0xf]
        %v1145 = vld [vmem:[#allocation7 + $0x14] sm:$0xf]
        %v1146 = vld [vmem:[#allocation7 + $0x18] sm:$0xf]
        %v1147 = vld [vmem:[#allocation7 + $0x1c] sm:$0xf]
        %v1148 = vld [vmem:[#allocation7 + $0x20] sm:$0xf]
        %v1149 = vld [vmem:[#allocation7 + $0x24] sm:$0xf]
        %v1150 = vld [vmem:[#allocation7 + $0x28] sm:$0xf]
        %v1151 = vld [vmem:[#allocation7 + $0x2c] sm:$0xf]
        %v1152 = vld [vmem:[#allocation7 + $0x30] sm:$0xf]
        %v1153 = vld [vmem:[#allocation7 + $0x34] sm:$0xf]
        %v1154 = vld [vmem:[#allocation7 + $0x38] sm:$0xf]
        %v1155 = vld [vmem:[#allocation7 + $0x3c] sm:$0xf]
        %v1156 = vld [vmem:[%s6] sm:$0x1]
        %v1158 = vperm.slane %v1156, 0
        %v1176 = vunpack.c.l.b16 %v1140
        %v1177 = vunpack.c.l.b16 %v1141
        %v1178 = vunpack.c.l.b16 %v1142
        %v1179 = vunpack.c.l.b16 %v1143
        %v1180 = vunpack.c.l.b16 %v1144
        %v1181 = vunpack.c.l.b16 %v1145
        %v1182 = vunpack.c.l.b16 %v1146
        %v1183 = vunpack.c.l.b16 %v1147
        %v1184 = vunpack.c.l.b16 %v1148
        %v1185 = vunpack.c.l.b16 %v1149
        %v1186 = vunpack.c.l.b16 %v1150
        %v1187 = vunpack.c.l.b16 %v1151
        %v1188 = vunpack.c.l.b16 %v1152
        %v1189 = vunpack.c.l.b16 %v1153
        %v1190 = vunpack.c.l.b16 %v1154
        %v1191 = vunpack.c.l.b16 %v1155
        %v1192 = vpack.c.b16 %v1177, %v1176
        %v1193 = vpack.c.b16 %v1179, %v1178
        %v1194 = vpack.c.b16 %v1181, %v1180
        %v1195 = vpack.c.b16 %v1183, %v1182
        %v1196 = vpack.c.b16 %v1185, %v1184
        %v1197 = vpack.c.b16 %v1187, %v1186
        %v1198 = vpack.c.b16 %v1189, %v1188
        %v1199 = vpack.c.b16 %v1191, %v1190
        %1208 = vmatpush.bf16.msra.mxu0 %v1199
        %1209 = vmatpush.bf16.msra.mxu0 %v1198
        %1210 = vmatpush.bf16.msra.mxu0 %v1197
        %1211 = vmatpush.bf16.msra.mxu0 %v1196
        %1212 = vmatpush.bf16.msra.mxu0 %v1195
        %1213 = vmatpush.bf16.msra.mxu0 %v1194
        %1214 = vmatpush.bf16.msra.mxu0 %v1193
        %1215 = vmatpush.bf16.msra.mxu0 %v1192
        %1216 = vmatmul.bf16.gmra.mxu0 %v1132
        %v1217 = vpop.f32.mrf.mxu0
        %v1218 = vadd.f32 %v1158, %v1217
        %v1219 = vpop.f32.mrf.mxu0
        %v1220 = vadd.f32 %v1158, %v1219
        %1221 = vmatmul.bf16.gmra.mxu0 %v1133
        %v1222 = vpop.f32.mrf.mxu0
        %v1223 = vadd.f32 %v1158, %v1222
        %v1224 = vpop.f32.mrf.mxu0
        %v1225 = vadd.f32 %v1158, %v1224
        %1226 = vmatmul.bf16.gmra.mxu0 %v1134
        %v1227 = vpop.f32.mrf.mxu0
        %v1228 = vadd.f32 %v1158, %v1227
        %v1229 = vpop.f32.mrf.mxu0
        %v1230 = vadd.f32 %v1158, %v1229
        %1231 = vmatmul.bf16.gmra.mxu0 %v1135
        %v1232 = vpop.f32.mrf.mxu0
        %v1233 = vadd.f32 %v1158, %v1232
        %v1234 = vpop.f32.mrf.mxu0
        %v1235 = vadd.f32 %v1158, %v1234
        %1236 = vmatmul.bf16.gmra.mxu0 %v1136
        %v1237 = vpop.f32.mrf.mxu0
        %v1238 = vadd.f32 %v1158, %v1237
        %v1239 = vpop.f32.mrf.mxu0
        %v1240 = vadd.f32 %v1158, %v1239
        %1241 = vmatmul.bf16.gmra.mxu0 %v1137
        %v1242 = vpop.f32.mrf.mxu0
        %v1243 = vadd.f32 %v1158, %v1242
        %v1244 = vpop.f32.mrf.mxu0
        %v1245 = vadd.f32 %v1158, %v1244
        %1246 = vmatmul.bf16.gmra.mxu0 %v1138
        %v1247 = vpop.f32.mrf.mxu0
        %v1248 = vadd.f32 %v1158, %v1247
        %v1249 = vpop.f32.mrf.mxu0
        %v1250 = vadd.f32 %v1158, %v1249
        %1251 = vmatmul.bf16.gmra.mxu0 %v1139
        %v1252 = vpop.f32.mrf.mxu0
        %v1253 = vadd.f32 %v1158, %v1252
        %v1254 = vpop.f32.mrf.mxu0
        %v1255 = vadd.f32 %v1158, %v1254
        %1256 = vdwg.mxu0
        %1257 = vadd.xlane.f32.xlu0 %v1218
        %v1258 = vpop.xlane.xlu0 %1257
        %1259 = vadd.xlane.f32.xlu0 %v1220
        %v1260 = vpop.xlane.xlu0 %1259
        %1261 = vadd.xlane.f32.xlu0 %v1223
        %v1262 = vpop.xlane.xlu0 %1261
        %1263 = vadd.xlane.f32.xlu0 %v1225
        %v1264 = vpop.xlane.xlu0 %1263
        %1265 = vadd.xlane.f32.xlu0 %v1228
        %v1266 = vpop.xlane.xlu0 %1265
        %1267 = vadd.xlane.f32.xlu0 %v1230
        %v1268 = vpop.xlane.xlu0 %1267
        %1269 = vadd.xlane.f32.xlu0 %v1233
        %v1270 = vpop.xlane.xlu0 %1269
        %1271 = vadd.xlane.f32.xlu0 %v1235
        %v1272 = vpop.xlane.xlu0 %1271
        %1273 = vadd.xlane.f32.xlu0 %v1238
        %v1274 = vpop.xlane.xlu0 %1273
        %1275 = vadd.xlane.f32.xlu0 %v1240
        %v1276 = vpop.xlane.xlu0 %1275
        %1277 = vadd.xlane.f32.xlu0 %v1243
        %v1278 = vpop.xlane.xlu0 %1277
        %1279 = vadd.xlane.f32.xlu0 %v1245
        %v1280 = vpop.xlane.xlu0 %1279
        %1281 = vadd.xlane.f32.xlu0 %v1248
        %v1282 = vpop.xlane.xlu0 %1281
        %1283 = vadd.xlane.f32.xlu0 %v1250
        %v1284 = vpop.xlane.xlu0 %1283
        %1285 = vadd.xlane.f32.xlu0 %v1253
        %v1286 = vpop.xlane.xlu0 %1285
        %1287 = vadd.xlane.f32.xlu0 %v1255
        %v1288 = vpop.xlane.xlu0 %1287
        %v1289 = vmul.f32 %v1218, %v1218
        %v1290 = vmul.f32 %v1220, %v1220
        %v1291 = vmul.f32 %v1223, %v1223
        %v1292 = vmul.f32 %v1225, %v1225
        %v1293 = vmul.f32 %v1228, %v1228
        %v1294 = vmul.f32 %v1230, %v1230
        %v1295 = vmul.f32 %v1233, %v1233
        %v1296 = vmul.f32 %v1235, %v1235
        %v1297 = vmul.f32 %v1238, %v1238
        %v1298 = vmul.f32 %v1240, %v1240
        %v1299 = vmul.f32 %v1243, %v1243
        %v1300 = vmul.f32 %v1245, %v1245
        %v1301 = vmul.f32 %v1248, %v1248
        %v1302 = vmul.f32 %v1250, %v1250
        %v1303 = vmul.f32 %v1253, %v1253
        %v1304 = vmul.f32 %v1255, %v1255
        %1305 = vadd.xlane.f32.xlu0 %v1289
        %v1306 = vpop.xlane.xlu0 %1305
        %1307 = vadd.xlane.f32.xlu0 %v1290
        %v1308 = vpop.xlane.xlu0 %1307
        %1309 = vadd.xlane.f32.xlu0 %v1291
        %v1310 = vpop.xlane.xlu0 %1309
        %1311 = vadd.xlane.f32.xlu0 %v1292
        %v1312 = vpop.xlane.xlu0 %1311
        %1313 = vadd.xlane.f32.xlu0 %v1293
        %v1314 = vpop.xlane.xlu0 %1313
        %1315 = vadd.xlane.f32.xlu0 %v1294
        %v1316 = vpop.xlane.xlu0 %1315
        %1317 = vadd.xlane.f32.xlu0 %v1295
        %v1318 = vpop.xlane.xlu0 %1317
        %1319 = vadd.xlane.f32.xlu0 %v1296
        %v1320 = vpop.xlane.xlu0 %1319
        %1321 = vadd.xlane.f32.xlu0 %v1297
        %v1322 = vpop.xlane.xlu0 %1321
        %1323 = vadd.xlane.f32.xlu0 %v1298
        %v1324 = vpop.xlane.xlu0 %1323
        %1325 = vadd.xlane.f32.xlu0 %v1299
        %v1326 = vpop.xlane.xlu0 %1325
        %1327 = vadd.xlane.f32.xlu0 %v1300
        %v1328 = vpop.xlane.xlu0 %1327
        %1329 = vadd.xlane.f32.xlu0 %v1301
        %v1330 = vpop.xlane.xlu0 %1329
        %1331 = vadd.xlane.f32.xlu0 %v1302
        %v1332 = vpop.xlane.xlu0 %1331
        %1333 = vadd.xlane.f32.xlu0 %v1303
        %v1334 = vpop.xlane.xlu0 %1333
        %1335 = vadd.xlane.f32.xlu0 %v1304
        %v1336 = vpop.xlane.xlu0 %1335
        %v1337 = vmul.f32 %v1258, 0.015625
        %v1338 = vmul.f32 %v1260, 0.015625
        %v1339 = vmul.f32 %v1262, 0.015625
        %v1340 = vmul.f32 %v1264, 0.015625
        %v1341 = vmul.f32 %v1266, 0.015625
        %v1342 = vmul.f32 %v1268, 0.015625
        %v1343 = vmul.f32 %v1270, 0.015625
        %v1344 = vmul.f32 %v1272, 0.015625
        %v1345 = vmul.f32 %v1274, 0.015625
        %v1346 = vmul.f32 %v1276, 0.015625
        %v1347 = vmul.f32 %v1278, 0.015625
        %v1348 = vmul.f32 %v1280, 0.015625
        %v1349 = vmul.f32 %v1282, 0.015625
        %v1350 = vmul.f32 %v1284, 0.015625
        %v1351 = vmul.f32 %v1286, 0.015625
        %v1352 = vmul.f32 %v1288, 0.015625
        %v1353 = vmul.f32 %v1306, 0.015625
        %v1354 = vmul.f32 %v1308, 0.015625
        %v1355 = vmul.f32 %v1310, 0.015625
        %v1356 = vmul.f32 %v1312, 0.015625
        %v1357 = vmul.f32 %v1314, 0.015625
        %v1358 = vmul.f32 %v1316, 0.015625
        %v1359 = vmul.f32 %v1318, 0.015625
        %v1360 = vmul.f32 %v1320, 0.015625
        %v1361 = vmul.f32 %v1322, 0.015625
        %v1362 = vmul.f32 %v1324, 0.015625
        %v1363 = vmul.f32 %v1326, 0.015625
        %v1364 = vmul.f32 %v1328, 0.015625
        %v1365 = vmul.f32 %v1330, 0.015625
        %v1366 = vmul.f32 %v1332, 0.015625
        %v1367 = vmul.f32 %v1334, 0.015625
        %v1368 = vmul.f32 %v1336, 0.015625
        %v1369 = vmul.f32 %v1337, %v1337
        %v1370 = vmul.f32 %v1338, %v1338
        %v1371 = vmul.f32 %v1339, %v1339
        %v1372 = vmul.f32 %v1340, %v1340
        %v1373 = vmul.f32 %v1341, %v1341
        %v1374 = vmul.f32 %v1342, %v1342
        %v1375 = vmul.f32 %v1343, %v1343
        %v1376 = vmul.f32 %v1344, %v1344
        %v1377 = vmul.f32 %v1345, %v1345
        %v1378 = vmul.f32 %v1346, %v1346
        %v1379 = vmul.f32 %v1347, %v1347
        %v1380 = vmul.f32 %v1348, %v1348
        %v1381 = vmul.f32 %v1349, %v1349
        %v1382 = vmul.f32 %v1350, %v1350
        %v1383 = vmul.f32 %v1351, %v1351
        %v1384 = vmul.f32 %v1352, %v1352
        %v1385 = vsub.f32 %v1353, %v1369
        %v1386 = vsub.f32 %v1354, %v1370
        %v1387 = vsub.f32 %v1355, %v1371
        %v1388 = vsub.f32 %v1356, %v1372
        %v1389 = vsub.f32 %v1357, %v1373
        %v1390 = vsub.f32 %v1358, %v1374
        %v1391 = vsub.f32 %v1359, %v1375
        %v1392 = vsub.f32 %v1360, %v1376
        %v1393 = vsub.f32 %v1361, %v1377
        %v1394 = vsub.f32 %v1362, %v1378
        %v1395 = vsub.f32 %v1363, %v1379
        %v1396 = vsub.f32 %v1364, %v1380
        %v1397 = vsub.f32 %v1365, %v1381
        %v1398 = vsub.f32 %v1366, %v1382
        %v1399 = vsub.f32 %v1367, %v1383
        %v1400 = vsub.f32 %v1368, %v1384
        %v1401 = vsub.f32 %v1218, %v1337
        %v1402 = vsub.f32 %v1220, %v1338
        %v1403 = vsub.f32 %v1223, %v1339
        %v1404 = vsub.f32 %v1225, %v1340
        %v1405 = vsub.f32 %v1228, %v1341
        %v1406 = vsub.f32 %v1230, %v1342
        %v1407 = vsub.f32 %v1233, %v1343
        %v1408 = vsub.f32 %v1235, %v1344
        %v1409 = vsub.f32 %v1238, %v1345
        %v1410 = vsub.f32 %v1240, %v1346
        %v1411 = vsub.f32 %v1243, %v1347
        %v1412 = vsub.f32 %v1245, %v1348
        %v1413 = vsub.f32 %v1248, %v1349
        %v1414 = vsub.f32 %v1250, %v1350
        %v1415 = vsub.f32 %v1253, %v1351
        %v1416 = vsub.f32 %v1255, %v1352
        %v1417 = vadd.f32 %v1385, 1e-05
        %v1418 = vadd.f32 %v1386, 1e-05
        %v1419 = vadd.f32 %v1387, 1e-05
        %v1420 = vadd.f32 %v1388, 1e-05
        %v1421 = vadd.f32 %v1389, 1e-05
        %v1422 = vadd.f32 %v1390, 1e-05
        %v1423 = vadd.f32 %v1391, 1e-05
        %v1424 = vadd.f32 %v1392, 1e-05
        %v1425 = vadd.f32 %v1393, 1e-05
        %v1426 = vadd.f32 %v1394, 1e-05
        %v1427 = vadd.f32 %v1395, 1e-05
        %v1428 = vadd.f32 %v1396, 1e-05
        %v1429 = vadd.f32 %v1397, 1e-05
        %v1430 = vadd.f32 %v1398, 1e-05
        %v1431 = vadd.f32 %v1399, 1e-05
        %v1432 = vadd.f32 %v1400, 1e-05
        %v1433 = vrsqrt.pop %v1417
        %v1434 = vmul.f32 %v1433, %v1417
        %v1435 = vmul.f32 %v1434, %v1433
        %v1436 = vmul.f32 0.5, %v1435
        %v1437 = vsub.f32 1.5, %v1436
        %v1438 = vmul.f32 %v1433, %v1437
        %vm1439 = vweird.f32 %v1417
        %vm1440 = vweird.f32 %v1433
        %vm1441 = vmor %vm1439, %vm1440
        %v1442 = vsel %vm1441, %v1433, %v1438
        %v1443 = vrsqrt.pop %v1418
        %v1444 = vmul.f32 %v1443, %v1418
        %v1445 = vmul.f32 %v1444, %v1443
        %v1446 = vmul.f32 0.5, %v1445
        %v1447 = vsub.f32 1.5, %v1446
        %v1448 = vmul.f32 %v1443, %v1447
        %vm1449 = vweird.f32 %v1418
        %vm1450 = vweird.f32 %v1443
        %vm1451 = vmor %vm1449, %vm1450
        %v1452 = vsel %vm1451, %v1443, %v1448
        %v1453 = vrsqrt.pop %v1419
        %v1454 = vmul.f32 %v1453, %v1419
        %v1455 = vmul.f32 %v1454, %v1453
        %v1456 = vmul.f32 0.5, %v1455
        %v1457 = vsub.f32 1.5, %v1456
        %v1458 = vmul.f32 %v1453, %v1457
        %vm1459 = vweird.f32 %v1419
        %vm1460 = vweird.f32 %v1453
        %vm1461 = vmor %vm1459, %vm1460
        %v1462 = vsel %vm1461, %v1453, %v1458
        %v1463 = vrsqrt.pop %v1420
        %v1464 = vmul.f32 %v1463, %v1420
        %v1465 = vmul.f32 %v1464, %v1463
        %v1466 = vmul.f32 0.5, %v1465
        %v1467 = vsub.f32 1.5, %v1466
        %v1468 = vmul.f32 %v1463, %v1467
        %vm1469 = vweird.f32 %v1420
        %vm1470 = vweird.f32 %v1463
        %vm1471 = vmor %vm1469, %vm1470
        %v1472 = vsel %vm1471, %v1463, %v1468
        %v1473 = vrsqrt.pop %v1421
        %v1474 = vmul.f32 %v1473, %v1421
        %v1475 = vmul.f32 %v1474, %v1473
        %v1476 = vmul.f32 0.5, %v1475
        %v1477 = vsub.f32 1.5, %v1476
        %v1478 = vmul.f32 %v1473, %v1477
        %vm1479 = vweird.f32 %v1421
        %vm1480 = vweird.f32 %v1473
        %vm1481 = vmor %vm1479, %vm1480
        %v1482 = vsel %vm1481, %v1473, %v1478
        %v1483 = vrsqrt.pop %v1422
        %v1484 = vmul.f32 %v1483, %v1422
        %v1485 = vmul.f32 %v1484, %v1483
        %v1486 = vmul.f32 0.5, %v1485
        %v1487 = vsub.f32 1.5, %v1486
        %v1488 = vmul.f32 %v1483, %v1487
        %vm1489 = vweird.f32 %v1422
        %vm1490 = vweird.f32 %v1483
        %vm1491 = vmor %vm1489, %vm1490
        %v1492 = vsel %vm1491, %v1483, %v1488
        %v1493 = vrsqrt.pop %v1423
        %v1494 = vmul.f32 %v1493, %v1423
        %v1495 = vmul.f32 %v1494, %v1493
        %v1496 = vmul.f32 0.5, %v1495
        %v1497 = vsub.f32 1.5, %v1496
        %v1498 = vmul.f32 %v1493, %v1497
        %vm1499 = vweird.f32 %v1423
        %vm1500 = vweird.f32 %v1493
        %vm1501 = vmor %vm1499, %vm1500
        %v1502 = vsel %vm1501, %v1493, %v1498
        %v1503 = vrsqrt.pop %v1424
        %v1504 = vmul.f32 %v1503, %v1424
        %v1505 = vmul.f32 %v1504, %v1503
        %v1506 = vmul.f32 0.5, %v1505
        %v1507 = vsub.f32 1.5, %v1506
        %v1508 = vmul.f32 %v1503, %v1507
        %vm1509 = vweird.f32 %v1424
        %vm1510 = vweird.f32 %v1503
        %vm1511 = vmor %vm1509, %vm1510
        %v1512 = vsel %vm1511, %v1503, %v1508
        %v1513 = vrsqrt.pop %v1425
        %v1514 = vmul.f32 %v1513, %v1425
        %v1515 = vmul.f32 %v1514, %v1513
        %v1516 = vmul.f32 0.5, %v1515
        %v1517 = vsub.f32 1.5, %v1516
        %v1518 = vmul.f32 %v1513, %v1517
        %vm1519 = vweird.f32 %v1425
        %vm1520 = vweird.f32 %v1513
        %vm1521 = vmor %vm1519, %vm1520
        %v1522 = vsel %vm1521, %v1513, %v1518
        %v1523 = vrsqrt.pop %v1426
        %v1524 = vmul.f32 %v1523, %v1426
        %v1525 = vmul.f32 %v1524, %v1523
        %v1526 = vmul.f32 0.5, %v1525
        %v1527 = vsub.f32 1.5, %v1526
        %v1528 = vmul.f32 %v1523, %v1527
        %vm1529 = vweird.f32 %v1426
        %vm1530 = vweird.f32 %v1523
        %vm1531 = vmor %vm1529, %vm1530
        %v1532 = vsel %vm1531, %v1523, %v1528
        %v1533 = vrsqrt.pop %v1427
        %v1534 = vmul.f32 %v1533, %v1427
        %v1535 = vmul.f32 %v1534, %v1533
        %v1536 = vmul.f32 0.5, %v1535
        %v1537 = vsub.f32 1.5, %v1536
        %v1538 = vmul.f32 %v1533, %v1537
        %vm1539 = vweird.f32 %v1427
        %vm1540 = vweird.f32 %v1533
        %vm1541 = vmor %vm1539, %vm1540
        %v1542 = vsel %vm1541, %v1533, %v1538
        %v1543 = vrsqrt.pop %v1428
        %v1544 = vmul.f32 %v1543, %v1428
        %v1545 = vmul.f32 %v1544, %v1543
        %v1546 = vmul.f32 0.5, %v1545
        %v1547 = vsub.f32 1.5, %v1546
        %v1548 = vmul.f32 %v1543, %v1547
        %vm1549 = vweird.f32 %v1428
        %vm1550 = vweird.f32 %v1543
        %vm1551 = vmor %vm1549, %vm1550
        %v1552 = vsel %vm1551, %v1543, %v1548
        %v1553 = vrsqrt.pop %v1429
        %v1554 = vmul.f32 %v1553, %v1429
        %v1555 = vmul.f32 %v1554, %v1553
        %v1556 = vmul.f32 0.5, %v1555
        %v1557 = vsub.f32 1.5, %v1556
        %v1558 = vmul.f32 %v1553, %v1557
        %vm1559 = vweird.f32 %v1429
        %vm1560 = vweird.f32 %v1553
        %vm1561 = vmor %vm1559, %vm1560
        %v1562 = vsel %vm1561, %v1553, %v1558
        %v1563 = vrsqrt.pop %v1430
        %v1564 = vmul.f32 %v1563, %v1430
        %v1565 = vmul.f32 %v1564, %v1563
        %v1566 = vmul.f32 0.5, %v1565
        %v1567 = vsub.f32 1.5, %v1566
        %v1568 = vmul.f32 %v1563, %v1567
        %vm1569 = vweird.f32 %v1430
        %vm1570 = vweird.f32 %v1563
        %vm1571 = vmor %vm1569, %vm1570
        %v1572 = vsel %vm1571, %v1563, %v1568
        %v1573 = vrsqrt.pop %v1431
        %v1574 = vmul.f32 %v1573, %v1431
        %v1575 = vmul.f32 %v1574, %v1573
        %v1576 = vmul.f32 0.5, %v1575
        %v1577 = vsub.f32 1.5, %v1576
        %v1578 = vmul.f32 %v1573, %v1577
        %vm1579 = vweird.f32 %v1431
        %vm1580 = vweird.f32 %v1573
        %vm1581 = vmor %vm1579, %vm1580
        %v1582 = vsel %vm1581, %v1573, %v1578
        %v1583 = vrsqrt.pop %v1432
        %v1584 = vmul.f32 %v1583, %v1432
        %v1585 = vmul.f32 %v1584, %v1583
        %v1586 = vmul.f32 0.5, %v1585
        %v1587 = vsub.f32 1.5, %v1586
        %v1588 = vmul.f32 %v1583, %v1587
        %vm1589 = vweird.f32 %v1432
        %vm1590 = vweird.f32 %v1583
        %vm1591 = vmor %vm1589, %vm1590
        %v1592 = vsel %vm1591, %v1583, %v1588
        %v1593 = vmul.f32 %v1401, %v1442
        %v1594 = vmul.f32 %v1402, %v1452
        %v1595 = vmul.f32 %v1403, %v1462
        %v1596 = vmul.f32 %v1404, %v1472
        %v1597 = vmul.f32 %v1405, %v1482
        %v1598 = vmul.f32 %v1406, %v1492
        %v1599 = vmul.f32 %v1407, %v1502
        %v1600 = vmul.f32 %v1408, %v1512
        %v1601 = vmul.f32 %v1409, %v1522
        %v1602 = vmul.f32 %v1410, %v1532
        %v1603 = vmul.f32 %v1411, %v1542
        %v1604 = vmul.f32 %v1412, %v1552
        %v1605 = vmul.f32 %v1413, %v1562
        %v1606 = vmul.f32 %v1414, %v1572
        %v1607 = vmul.f32 %v1415, %v1582
        %v1608 = vmul.f32 %v1416, %v1592
        %v1609 = vld [vmem:[%s7] sm:$0x1]
        %v1611 = vperm.slane %v1609, 0
        %v1613 = vmul.f32 %v1593, %v1611
        %v1614 = vmul.f32 %v1594, %v1611
        %v1615 = vmul.f32 %v1595, %v1611
        %v1616 = vmul.f32 %v1596, %v1611
        %v1617 = vmul.f32 %v1597, %v1611
        %v1618 = vmul.f32 %v1598, %v1611
        %v1619 = vmul.f32 %v1599, %v1611
        %v1620 = vmul.f32 %v1600, %v1611
        %v1621 = vmul.f32 %v1601, %v1611
        %v1622 = vmul.f32 %v1602, %v1611
        %v1623 = vmul.f32 %v1603, %v1611
        %v1624 = vmul.f32 %v1604, %v1611
        %v1625 = vmul.f32 %v1605, %v1611
        %v1626 = vmul.f32 %v1606, %v1611
        %v1627 = vmul.f32 %v1607, %v1611
        %v1628 = vmul.f32 %v1608, %v1611
        %v1629 = vld [vmem:[%s8] sm:$0x1]
        %v1631 = vperm.slane %v1629, 0
        %v1633 = vadd.f32 %v1613, %v1631
        %v1634 = vadd.f32 %v1614, %v1631
        %v1635 = vadd.f32 %v1615, %v1631
        %v1636 = vadd.f32 %v1616, %v1631
        %v1637 = vadd.f32 %v1617, %v1631
        %v1638 = vadd.f32 %v1618, %v1631
        %v1639 = vadd.f32 %v1619, %v1631
        %v1640 = vadd.f32 %v1620, %v1631
        %v1641 = vadd.f32 %v1621, %v1631
        %v1642 = vadd.f32 %v1622, %v1631
        %v1643 = vadd.f32 %v1623, %v1631
        %v1644 = vadd.f32 %v1624, %v1631
        %v1645 = vadd.f32 %v1625, %v1631
        %v1646 = vadd.f32 %v1626, %v1631
        %v1647 = vadd.f32 %v1627, %v1631
        %v1648 = vadd.f32 %v1628, %v1631
        %v1649 = vmax.f32 %v1633, 0.0
        %v1650 = vmax.f32 %v1634, 0.0
        %v1651 = vmax.f32 %v1635, 0.0
        %v1652 = vmax.f32 %v1636, 0.0
        %v1653 = vmax.f32 %v1637, 0.0
        %v1654 = vmax.f32 %v1638, 0.0
        %v1655 = vmax.f32 %v1639, 0.0
        %v1656 = vmax.f32 %v1640, 0.0
        %v1657 = vmax.f32 %v1641, 0.0
        %v1658 = vmax.f32 %v1642, 0.0
        %v1659 = vmax.f32 %v1643, 0.0
        %v1660 = vmax.f32 %v1644, 0.0
        %v1661 = vmax.f32 %v1645, 0.0
        %v1662 = vmax.f32 %v1646, 0.0
        %v1663 = vmax.f32 %v1647, 0.0
        %v1664 = vmax.f32 %v1648, 0.0
        %v1665 = vpack.c.bf16 %v1650, %v1649
        %v1666 = vpack.c.bf16 %v1652, %v1651
        %v1667 = vpack.c.bf16 %v1654, %v1653
        %v1668 = vpack.c.bf16 %v1656, %v1655
        %v1669 = vpack.c.bf16 %v1658, %v1657
        %v1670 = vpack.c.bf16 %v1660, %v1659
        %v1671 = vpack.c.bf16 %v1662, %v1661
        %v1672 = vpack.c.bf16 %v1664, %v1663
        %v1673 = vld [vmem:[#allocation8] sm:$0xf]
        %v1674 = vld [vmem:[#allocation8 + $0x4] sm:$0xf]
        %v1675 = vld [vmem:[#allocation8 + $0x8] sm:$0xf]
        %v1676 = vld [vmem:[#allocation8 + $0xc] sm:$0xf]
        %v1677 = vld [vmem:[#allocation8 + $0x10] sm:$0xf]
        %v1678 = vld [vmem:[#allocation8 + $0x14] sm:$0xf]
        %v1679 = vld [vmem:[#allocation8 + $0x18] sm:$0xf]
        %v1680 = vld [vmem:[#allocation8 + $0x1c] sm:$0xf]
        %v1681 = vld [vmem:[#allocation8 + $0x20] sm:$0xf]
        %v1682 = vld [vmem:[#allocation8 + $0x24] sm:$0xf]
        %v1683 = vld [vmem:[#allocation8 + $0x28] sm:$0xf]
        %v1684 = vld [vmem:[#allocation8 + $0x2c] sm:$0xf]
        %v1685 = vld [vmem:[#allocation8 + $0x30] sm:$0xf]
        %v1686 = vld [vmem:[#allocation8 + $0x34] sm:$0xf]
        %v1687 = vld [vmem:[#allocation8 + $0x38] sm:$0xf]
        %v1688 = vld [vmem:[#allocation8 + $0x3c] sm:$0xf]
        %v1689 = vld [vmem:[%s10] sm:$0x1]
        %v1691 = vperm.slane %v1689, 0
        %v1709 = vunpack.c.l.b16 %v1673
        %v1710 = vunpack.c.l.b16 %v1674
        %v1711 = vunpack.c.l.b16 %v1675
        %v1712 = vunpack.c.l.b16 %v1676
        %v1713 = vunpack.c.l.b16 %v1677
        %v1714 = vunpack.c.l.b16 %v1678
        %v1715 = vunpack.c.l.b16 %v1679
        %v1716 = vunpack.c.l.b16 %v1680
        %v1717 = vunpack.c.l.b16 %v1681
        %v1718 = vunpack.c.l.b16 %v1682
        %v1719 = vunpack.c.l.b16 %v1683
        %v1720 = vunpack.c.l.b16 %v1684
        %v1721 = vunpack.c.l.b16 %v1685
        %v1722 = vunpack.c.l.b16 %v1686
        %v1723 = vunpack.c.l.b16 %v1687
        %v1724 = vunpack.c.l.b16 %v1688
        %v1725 = vpack.c.b16 %v1710, %v1709
        %v1726 = vpack.c.b16 %v1712, %v1711
        %v1727 = vpack.c.b16 %v1714, %v1713
        %v1728 = vpack.c.b16 %v1716, %v1715
        %v1729 = vpack.c.b16 %v1718, %v1717
        %v1730 = vpack.c.b16 %v1720, %v1719
        %v1731 = vpack.c.b16 %v1722, %v1721
        %v1732 = vpack.c.b16 %v1724, %v1723
        %1741 = vmatpush.bf16.msra.mxu0 %v1732
        %1742 = vmatpush.bf16.msra.mxu0 %v1731
        %1743 = vmatpush.bf16.msra.mxu0 %v1730
        %1744 = vmatpush.bf16.msra.mxu0 %v1729
        %1745 = vmatpush.bf16.msra.mxu0 %v1728
        %1746 = vmatpush.bf16.msra.mxu0 %v1727
        %1747 = vmatpush.bf16.msra.mxu0 %v1726
        %1748 = vmatpush.bf16.msra.mxu0 %v1725
        %1749 = vmatmul.bf16.gmra.mxu0 %v1665
        %v1750 = vpop.f32.mrf.mxu0
        %v1751 = vadd.f32 %v1691, %v1750
        %v1752 = vpop.f32.mrf.mxu0
        %v1753 = vadd.f32 %v1691, %v1752
        %1754 = vmatmul.bf16.gmra.mxu0 %v1666
        %v1755 = vpop.f32.mrf.mxu0
        %v1756 = vadd.f32 %v1691, %v1755
        %v1757 = vpop.f32.mrf.mxu0
        %v1758 = vadd.f32 %v1691, %v1757
        %1759 = vmatmul.bf16.gmra.mxu0 %v1667
        %v1760 = vpop.f32.mrf.mxu0
        %v1761 = vadd.f32 %v1691, %v1760
        %v1762 = vpop.f32.mrf.mxu0
        %v1763 = vadd.f32 %v1691, %v1762
        %1764 = vmatmul.bf16.gmra.mxu0 %v1668
        %v1765 = vpop.f32.mrf.mxu0
        %v1766 = vadd.f32 %v1691, %v1765
        %v1767 = vpop.f32.mrf.mxu0
        %v1768 = vadd.f32 %v1691, %v1767
        %1769 = vmatmul.bf16.gmra.mxu0 %v1669
        %v1770 = vpop.f32.mrf.mxu0
        %v1771 = vadd.f32 %v1691, %v1770
        %v1772 = vpop.f32.mrf.mxu0
        %v1773 = vadd.f32 %v1691, %v1772
        %1774 = vmatmul.bf16.gmra.mxu0 %v1670
        %v1775 = vpop.f32.mrf.mxu0
        %v1776 = vadd.f32 %v1691, %v1775
        %v1777 = vpop.f32.mrf.mxu0
        %v1778 = vadd.f32 %v1691, %v1777
        %1779 = vmatmul.bf16.gmra.mxu0 %v1671
        %v1780 = vpop.f32.mrf.mxu0
        %v1781 = vadd.f32 %v1691, %v1780
        %v1782 = vpop.f32.mrf.mxu0
        %v1783 = vadd.f32 %v1691, %v1782
        %1784 = vmatmul.bf16.gmra.mxu0 %v1672
        %v1785 = vpop.f32.mrf.mxu0
        %v1786 = vadd.f32 %v1691, %v1785
        %v1787 = vpop.f32.mrf.mxu0
        %v1788 = vadd.f32 %v1691, %v1787
        %1789 = vdwg.mxu0
        %1790 = vadd.xlane.f32.xlu0 %v1751
        %v1791 = vpop.xlane.xlu0 %1790
        %1792 = vadd.xlane.f32.xlu0 %v1753
        %v1793 = vpop.xlane.xlu0 %1792
        %1794 = vadd.xlane.f32.xlu0 %v1756
        %v1795 = vpop.xlane.xlu0 %1794
        %1796 = vadd.xlane.f32.xlu0 %v1758
        %v1797 = vpop.xlane.xlu0 %1796
        %1798 = vadd.xlane.f32.xlu0 %v1761
        %v1799 = vpop.xlane.xlu0 %1798
        %1800 = vadd.xlane.f32.xlu0 %v1763
        %v1801 = vpop.xlane.xlu0 %1800
        %1802 = vadd.xlane.f32.xlu0 %v1766
        %v1803 = vpop.xlane.xlu0 %1802
        %1804 = vadd.xlane.f32.xlu0 %v1768
        %v1805 = vpop.xlane.xlu0 %1804
        %1806 = vadd.xlane.f32.xlu0 %v1771
        %v1807 = vpop.xlane.xlu0 %1806
        %1808 = vadd.xlane.f32.xlu0 %v1773
        %v1809 = vpop.xlane.xlu0 %1808
        %1810 = vadd.xlane.f32.xlu0 %v1776
        %v1811 = vpop.xlane.xlu0 %1810
        %1812 = vadd.xlane.f32.xlu0 %v1778
        %v1813 = vpop.xlane.xlu0 %1812
        %1814 = vadd.xlane.f32.xlu0 %v1781
        %v1815 = vpop.xlane.xlu0 %1814
        %1816 = vadd.xlane.f32.xlu0 %v1783
        %v1817 = vpop.xlane.xlu0 %1816
        %1818 = vadd.xlane.f32.xlu0 %v1786
        %v1819 = vpop.xlane.xlu0 %1818
        %1820 = vadd.xlane.f32.xlu0 %v1788
        %v1821 = vpop.xlane.xlu0 %1820
        %v1822 = vmul.f32 %v1751, %v1751
        %v1823 = vmul.f32 %v1753, %v1753
        %v1824 = vmul.f32 %v1756, %v1756
        %v1825 = vmul.f32 %v1758, %v1758
        %v1826 = vmul.f32 %v1761, %v1761
        %v1827 = vmul.f32 %v1763, %v1763
        %v1828 = vmul.f32 %v1766, %v1766
        %v1829 = vmul.f32 %v1768, %v1768
        %v1830 = vmul.f32 %v1771, %v1771
        %v1831 = vmul.f32 %v1773, %v1773
        %v1832 = vmul.f32 %v1776, %v1776
        %v1833 = vmul.f32 %v1778, %v1778
        %v1834 = vmul.f32 %v1781, %v1781
        %v1835 = vmul.f32 %v1783, %v1783
        %v1836 = vmul.f32 %v1786, %v1786
        %v1837 = vmul.f32 %v1788, %v1788
        %1838 = vadd.xlane.f32.xlu0 %v1822
        %v1839 = vpop.xlane.xlu0 %1838
        %1840 = vadd.xlane.f32.xlu0 %v1823
        %v1841 = vpop.xlane.xlu0 %1840
        %1842 = vadd.xlane.f32.xlu0 %v1824
        %v1843 = vpop.xlane.xlu0 %1842
        %1844 = vadd.xlane.f32.xlu0 %v1825
        %v1845 = vpop.xlane.xlu0 %1844
        %1846 = vadd.xlane.f32.xlu0 %v1826
        %v1847 = vpop.xlane.xlu0 %1846
        %1848 = vadd.xlane.f32.xlu0 %v1827
        %v1849 = vpop.xlane.xlu0 %1848
        %1850 = vadd.xlane.f32.xlu0 %v1828
        %v1851 = vpop.xlane.xlu0 %1850
        %1852 = vadd.xlane.f32.xlu0 %v1829
        %v1853 = vpop.xlane.xlu0 %1852
        %1854 = vadd.xlane.f32.xlu0 %v1830
        %v1855 = vpop.xlane.xlu0 %1854
        %1856 = vadd.xlane.f32.xlu0 %v1831
        %v1857 = vpop.xlane.xlu0 %1856
        %1858 = vadd.xlane.f32.xlu0 %v1832
        %v1859 = vpop.xlane.xlu0 %1858
        %1860 = vadd.xlane.f32.xlu0 %v1833
        %v1861 = vpop.xlane.xlu0 %1860
        %1862 = vadd.xlane.f32.xlu0 %v1834
        %v1863 = vpop.xlane.xlu0 %1862
        %1864 = vadd.xlane.f32.xlu0 %v1835
        %v1865 = vpop.xlane.xlu0 %1864
        %1866 = vadd.xlane.f32.xlu0 %v1836
        %v1867 = vpop.xlane.xlu0 %1866
        %1868 = vadd.xlane.f32.xlu0 %v1837
        %v1869 = vpop.xlane.xlu0 %1868
        %v1870 = vmul.f32 %v1791, 0.015625
        %v1871 = vmul.f32 %v1793, 0.015625
        %v1872 = vmul.f32 %v1795, 0.015625
        %v1873 = vmul.f32 %v1797, 0.015625
        %v1874 = vmul.f32 %v1799, 0.015625
        %v1875 = vmul.f32 %v1801, 0.015625
        %v1876 = vmul.f32 %v1803, 0.015625
        %v1877 = vmul.f32 %v1805, 0.015625
        %v1878 = vmul.f32 %v1807, 0.015625
        %v1879 = vmul.f32 %v1809, 0.015625
        %v1880 = vmul.f32 %v1811, 0.015625
        %v1881 = vmul.f32 %v1813, 0.015625
        %v1882 = vmul.f32 %v1815, 0.015625
        %v1883 = vmul.f32 %v1817, 0.015625
        %v1884 = vmul.f32 %v1819, 0.015625
        %v1885 = vmul.f32 %v1821, 0.015625
        %v1886 = vmul.f32 %v1839, 0.015625
        %v1887 = vmul.f32 %v1841, 0.015625
        %v1888 = vmul.f32 %v1843, 0.015625
        %v1889 = vmul.f32 %v1845, 0.015625
        %v1890 = vmul.f32 %v1847, 0.015625
        %v1891 = vmul.f32 %v1849, 0.015625
        %v1892 = vmul.f32 %v1851, 0.015625
        %v1893 = vmul.f32 %v1853, 0.015625
        %v1894 = vmul.f32 %v1855, 0.015625
        %v1895 = vmul.f32 %v1857, 0.015625
        %v1896 = vmul.f32 %v1859, 0.015625
        %v1897 = vmul.f32 %v1861, 0.015625
        %v1898 = vmul.f32 %v1863, 0.015625
        %v1899 = vmul.f32 %v1865, 0.015625
        %v1900 = vmul.f32 %v1867, 0.015625
        %v1901 = vmul.f32 %v1869, 0.015625
        %v1902 = vmul.f32 %v1870, %v1870
        %v1903 = vmul.f32 %v1871, %v1871
        %v1904 = vmul.f32 %v1872, %v1872
        %v1905 = vmul.f32 %v1873, %v1873
        %v1906 = vmul.f32 %v1874, %v1874
        %v1907 = vmul.f32 %v1875, %v1875
        %v1908 = vmul.f32 %v1876, %v1876
        %v1909 = vmul.f32 %v1877, %v1877
        %v1910 = vmul.f32 %v1878, %v1878
        %v1911 = vmul.f32 %v1879, %v1879
        %v1912 = vmul.f32 %v1880, %v1880
        %v1913 = vmul.f32 %v1881, %v1881
        %v1914 = vmul.f32 %v1882, %v1882
        %v1915 = vmul.f32 %v1883, %v1883
        %v1916 = vmul.f32 %v1884, %v1884
        %v1917 = vmul.f32 %v1885, %v1885
        %v1918 = vsub.f32 %v1886, %v1902
        %v1919 = vsub.f32 %v1887, %v1903
        %v1920 = vsub.f32 %v1888, %v1904
        %v1921 = vsub.f32 %v1889, %v1905
        %v1922 = vsub.f32 %v1890, %v1906
        %v1923 = vsub.f32 %v1891, %v1907
        %v1924 = vsub.f32 %v1892, %v1908
        %v1925 = vsub.f32 %v1893, %v1909
        %v1926 = vsub.f32 %v1894, %v1910
        %v1927 = vsub.f32 %v1895, %v1911
        %v1928 = vsub.f32 %v1896, %v1912
        %v1929 = vsub.f32 %v1897, %v1913
        %v1930 = vsub.f32 %v1898, %v1914
        %v1931 = vsub.f32 %v1899, %v1915
        %v1932 = vsub.f32 %v1900, %v1916
        %v1933 = vsub.f32 %v1901, %v1917
        %v1934 = vsub.f32 %v1751, %v1870
        %v1935 = vsub.f32 %v1753, %v1871
        %v1936 = vsub.f32 %v1756, %v1872
        %v1937 = vsub.f32 %v1758, %v1873
        %v1938 = vsub.f32 %v1761, %v1874
        %v1939 = vsub.f32 %v1763, %v1875
        %v1940 = vsub.f32 %v1766, %v1876
        %v1941 = vsub.f32 %v1768, %v1877
        %v1942 = vsub.f32 %v1771, %v1878
        %v1943 = vsub.f32 %v1773, %v1879
        %v1944 = vsub.f32 %v1776, %v1880
        %v1945 = vsub.f32 %v1778, %v1881
        %v1946 = vsub.f32 %v1781, %v1882
        %v1947 = vsub.f32 %v1783, %v1883
        %v1948 = vsub.f32 %v1786, %v1884
        %v1949 = vsub.f32 %v1788, %v1885
        %v1950 = vadd.f32 %v1918, 1e-05
        %v1951 = vadd.f32 %v1919, 1e-05
        %v1952 = vadd.f32 %v1920, 1e-05
        %v1953 = vadd.f32 %v1921, 1e-05
        %v1954 = vadd.f32 %v1922, 1e-05
        %v1955 = vadd.f32 %v1923, 1e-05
        %v1956 = vadd.f32 %v1924, 1e-05
        %v1957 = vadd.f32 %v1925, 1e-05
        %v1958 = vadd.f32 %v1926, 1e-05
        %v1959 = vadd.f32 %v1927, 1e-05
        %v1960 = vadd.f32 %v1928, 1e-05
        %v1961 = vadd.f32 %v1929, 1e-05
        %v1962 = vadd.f32 %v1930, 1e-05
        %v1963 = vadd.f32 %v1931, 1e-05
        %v1964 = vadd.f32 %v1932, 1e-05
        %v1965 = vadd.f32 %v1933, 1e-05
        %v1966 = vrsqrt.pop %v1950
        %v1967 = vmul.f32 %v1966, %v1950
        %v1968 = vmul.f32 %v1967, %v1966
        %v1969 = vmul.f32 0.5, %v1968
        %v1970 = vsub.f32 1.5, %v1969
        %v1971 = vmul.f32 %v1966, %v1970
        %vm1972 = vweird.f32 %v1950
        %vm1973 = vweird.f32 %v1966
        %vm1974 = vmor %vm1972, %vm1973
        %v1975 = vsel %vm1974, %v1966, %v1971
        %v1976 = vrsqrt.pop %v1951
        %v1977 = vmul.f32 %v1976, %v1951
        %v1978 = vmul.f32 %v1977, %v1976
        %v1979 = vmul.f32 0.5, %v1978
        %v1980 = vsub.f32 1.5, %v1979
        %v1981 = vmul.f32 %v1976, %v1980
        %vm1982 = vweird.f32 %v1951
        %vm1983 = vweird.f32 %v1976
        %vm1984 = vmor %vm1982, %vm1983
        %v1985 = vsel %vm1984, %v1976, %v1981
        %v1986 = vrsqrt.pop %v1952
        %v1987 = vmul.f32 %v1986, %v1952
        %v1988 = vmul.f32 %v1987, %v1986
        %v1989 = vmul.f32 0.5, %v1988
        %v1990 = vsub.f32 1.5, %v1989
        %v1991 = vmul.f32 %v1986, %v1990
        %vm1992 = vweird.f32 %v1952
        %vm1993 = vweird.f32 %v1986
        %vm1994 = vmor %vm1992, %vm1993
        %v1995 = vsel %vm1994, %v1986, %v1991
        %v1996 = vrsqrt.pop %v1953
        %v1997 = vmul.f32 %v1996, %v1953
        %v1998 = vmul.f32 %v1997, %v1996
        %v1999 = vmul.f32 0.5, %v1998
        %v2000 = vsub.f32 1.5, %v1999
        %v2001 = vmul.f32 %v1996, %v2000
        %vm2002 = vweird.f32 %v1953
        %vm2003 = vweird.f32 %v1996
        %vm2004 = vmor %vm2002, %vm2003
        %v2005 = vsel %vm2004, %v1996, %v2001
        %v2006 = vrsqrt.pop %v1954
        %v2007 = vmul.f32 %v2006, %v1954
        %v2008 = vmul.f32 %v2007, %v2006
        %v2009 = vmul.f32 0.5, %v2008
        %v2010 = vsub.f32 1.5, %v2009
        %v2011 = vmul.f32 %v2006, %v2010
        %vm2012 = vweird.f32 %v1954
        %vm2013 = vweird.f32 %v2006
        %vm2014 = vmor %vm2012, %vm2013
        %v2015 = vsel %vm2014, %v2006, %v2011
        %v2016 = vrsqrt.pop %v1955
        %v2017 = vmul.f32 %v2016, %v1955
        %v2018 = vmul.f32 %v2017, %v2016
        %v2019 = vmul.f32 0.5, %v2018
        %v2020 = vsub.f32 1.5, %v2019
        %v2021 = vmul.f32 %v2016, %v2020
        %vm2022 = vweird.f32 %v1955
        %vm2023 = vweird.f32 %v2016
        %vm2024 = vmor %vm2022, %vm2023
        %v2025 = vsel %vm2024, %v2016, %v2021
        %v2026 = vrsqrt.pop %v1956
        %v2027 = vmul.f32 %v2026, %v1956
        %v2028 = vmul.f32 %v2027, %v2026
        %v2029 = vmul.f32 0.5, %v2028
        %v2030 = vsub.f32 1.5, %v2029
        %v2031 = vmul.f32 %v2026, %v2030
        %vm2032 = vweird.f32 %v1956
        %vm2033 = vweird.f32 %v2026
        %vm2034 = vmor %vm2032, %vm2033
        %v2035 = vsel %vm2034, %v2026, %v2031
        %v2036 = vrsqrt.pop %v1957
        %v2037 = vmul.f32 %v2036, %v1957
        %v2038 = vmul.f32 %v2037, %v2036
        %v2039 = vmul.f32 0.5, %v2038
        %v2040 = vsub.f32 1.5, %v2039
        %v2041 = vmul.f32 %v2036, %v2040
        %vm2042 = vweird.f32 %v1957
        %vm2043 = vweird.f32 %v2036
        %vm2044 = vmor %vm2042, %vm2043
        %v2045 = vsel %vm2044, %v2036, %v2041
        %v2046 = vrsqrt.pop %v1958
        %v2047 = vmul.f32 %v2046, %v1958
        %v2048 = vmul.f32 %v2047, %v2046
        %v2049 = vmul.f32 0.5, %v2048
        %v2050 = vsub.f32 1.5, %v2049
        %v2051 = vmul.f32 %v2046, %v2050
        %vm2052 = vweird.f32 %v1958
        %vm2053 = vweird.f32 %v2046
        %vm2054 = vmor %vm2052, %vm2053
        %v2055 = vsel %vm2054, %v2046, %v2051
        %v2056 = vrsqrt.pop %v1959
        %v2057 = vmul.f32 %v2056, %v1959
        %v2058 = vmul.f32 %v2057, %v2056
        %v2059 = vmul.f32 0.5, %v2058
        %v2060 = vsub.f32 1.5, %v2059
        %v2061 = vmul.f32 %v2056, %v2060
        %vm2062 = vweird.f32 %v1959
        %vm2063 = vweird.f32 %v2056
        %vm2064 = vmor %vm2062, %vm2063
        %v2065 = vsel %vm2064, %v2056, %v2061
        %v2066 = vrsqrt.pop %v1960
        %v2067 = vmul.f32 %v2066, %v1960
        %v2068 = vmul.f32 %v2067, %v2066
        %v2069 = vmul.f32 0.5, %v2068
        %v2070 = vsub.f32 1.5, %v2069
        %v2071 = vmul.f32 %v2066, %v2070
        %vm2072 = vweird.f32 %v1960
        %vm2073 = vweird.f32 %v2066
        %vm2074 = vmor %vm2072, %vm2073
        %v2075 = vsel %vm2074, %v2066, %v2071
        %v2076 = vrsqrt.pop %v1961
        %v2077 = vmul.f32 %v2076, %v1961
        %v2078 = vmul.f32 %v2077, %v2076
        %v2079 = vmul.f32 0.5, %v2078
        %v2080 = vsub.f32 1.5, %v2079
        %v2081 = vmul.f32 %v2076, %v2080
        %vm2082 = vweird.f32 %v1961
        %vm2083 = vweird.f32 %v2076
        %vm2084 = vmor %vm2082, %vm2083
        %v2085 = vsel %vm2084, %v2076, %v2081
        %v2086 = vrsqrt.pop %v1962
        %v2087 = vmul.f32 %v2086, %v1962
        %v2088 = vmul.f32 %v2087, %v2086
        %v2089 = vmul.f32 0.5, %v2088
        %v2090 = vsub.f32 1.5, %v2089
        %v2091 = vmul.f32 %v2086, %v2090
        %vm2092 = vweird.f32 %v1962
        %vm2093 = vweird.f32 %v2086
        %vm2094 = vmor %vm2092, %vm2093
        %v2095 = vsel %vm2094, %v2086, %v2091
        %v2096 = vrsqrt.pop %v1963
        %v2097 = vmul.f32 %v2096, %v1963
        %v2098 = vmul.f32 %v2097, %v2096
        %v2099 = vmul.f32 0.5, %v2098
        %v2100 = vsub.f32 1.5, %v2099
        %v2101 = vmul.f32 %v2096, %v2100
        %vm2102 = vweird.f32 %v1963
        %vm2103 = vweird.f32 %v2096
        %vm2104 = vmor %vm2102, %vm2103
        %v2105 = vsel %vm2104, %v2096, %v2101
        %v2106 = vrsqrt.pop %v1964
        %v2107 = vmul.f32 %v2106, %v1964
        %v2108 = vmul.f32 %v2107, %v2106
        %v2109 = vmul.f32 0.5, %v2108
        %v2110 = vsub.f32 1.5, %v2109
        %v2111 = vmul.f32 %v2106, %v2110
        %vm2112 = vweird.f32 %v1964
        %vm2113 = vweird.f32 %v2106
        %vm2114 = vmor %vm2112, %vm2113
        %v2115 = vsel %vm2114, %v2106, %v2111
        %v2116 = vrsqrt.pop %v1965
        %v2117 = vmul.f32 %v2116, %v1965
        %v2118 = vmul.f32 %v2117, %v2116
        %v2119 = vmul.f32 0.5, %v2118
        %v2120 = vsub.f32 1.5, %v2119
        %v2121 = vmul.f32 %v2116, %v2120
        %vm2122 = vweird.f32 %v1965
        %vm2123 = vweird.f32 %v2116
        %vm2124 = vmor %vm2122, %vm2123
        %v2125 = vsel %vm2124, %v2116, %v2121
        %v2126 = vmul.f32 %v1934, %v1975
        %v2127 = vmul.f32 %v1935, %v1985
        %v2128 = vmul.f32 %v1936, %v1995
        %v2129 = vmul.f32 %v1937, %v2005
        %v2130 = vmul.f32 %v1938, %v2015
        %v2131 = vmul.f32 %v1939, %v2025
        %v2132 = vmul.f32 %v1940, %v2035
        %v2133 = vmul.f32 %v1941, %v2045
        %v2134 = vmul.f32 %v1942, %v2055
        %v2135 = vmul.f32 %v1943, %v2065
        %v2136 = vmul.f32 %v1944, %v2075
        %v2137 = vmul.f32 %v1945, %v2085
        %v2138 = vmul.f32 %v1946, %v2095
        %v2139 = vmul.f32 %v1947, %v2105
        %v2140 = vmul.f32 %v1948, %v2115
        %v2141 = vmul.f32 %v1949, %v2125
        %v2142 = vld [vmem:[%s11] sm:$0x1]
        %v2144 = vperm.slane %v2142, 0
        %v2146 = vmul.f32 %v2126, %v2144
        %v2147 = vmul.f32 %v2127, %v2144
        %v2148 = vmul.f32 %v2128, %v2144
        %v2149 = vmul.f32 %v2129, %v2144
        %v2150 = vmul.f32 %v2130, %v2144
        %v2151 = vmul.f32 %v2131, %v2144
        %v2152 = vmul.f32 %v2132, %v2144
        %v2153 = vmul.f32 %v2133, %v2144
        %v2154 = vmul.f32 %v2134, %v2144
        %v2155 = vmul.f32 %v2135, %v2144
        %v2156 = vmul.f32 %v2136, %v2144
        %v2157 = vmul.f32 %v2137, %v2144
        %v2158 = vmul.f32 %v2138, %v2144
        %v2159 = vmul.f32 %v2139, %v2144
        %v2160 = vmul.f32 %v2140, %v2144
        %v2161 = vmul.f32 %v2141, %v2144
        %v2162 = vld [vmem:[%s12] sm:$0x1]
        %v2164 = vperm.slane %v2162, 0
        %v2166 = vadd.f32 %v2146, %v2164
        %v2167 = vadd.f32 %v2147, %v2164
        %v2168 = vadd.f32 %v2148, %v2164
        %v2169 = vadd.f32 %v2149, %v2164
        %v2170 = vadd.f32 %v2150, %v2164
        %v2171 = vadd.f32 %v2151, %v2164
        %v2172 = vadd.f32 %v2152, %v2164
        %v2173 = vadd.f32 %v2153, %v2164
        %v2174 = vadd.f32 %v2154, %v2164
        %v2175 = vadd.f32 %v2155, %v2164
        %v2176 = vadd.f32 %v2156, %v2164
        %v2177 = vadd.f32 %v2157, %v2164
        %v2178 = vadd.f32 %v2158, %v2164
        %v2179 = vadd.f32 %v2159, %v2164
        %v2180 = vadd.f32 %v2160, %v2164
        %v2181 = vadd.f32 %v2161, %v2164
        %v2182 = vmax.f32 %v2166, 0.0
        %v2183 = vmax.f32 %v2167, 0.0
        %v2184 = vmax.f32 %v2168, 0.0
        %v2185 = vmax.f32 %v2169, 0.0
        %v2186 = vmax.f32 %v2170, 0.0
        %v2187 = vmax.f32 %v2171, 0.0
        %v2188 = vmax.f32 %v2172, 0.0
        %v2189 = vmax.f32 %v2173, 0.0
        %v2190 = vmax.f32 %v2174, 0.0
        %v2191 = vmax.f32 %v2175, 0.0
        %v2192 = vmax.f32 %v2176, 0.0
        %v2193 = vmax.f32 %v2177, 0.0
        %v2194 = vmax.f32 %v2178, 0.0
        %v2195 = vmax.f32 %v2179, 0.0
        %v2196 = vmax.f32 %v2180, 0.0
        %v2197 = vmax.f32 %v2181, 0.0
        %v2198 = vpack.c.bf16 %v2183, %v2182
        %v2199 = vpack.c.bf16 %v2185, %v2184
        %v2200 = vpack.c.bf16 %v2187, %v2186
        %v2201 = vpack.c.bf16 %v2189, %v2188
        %v2202 = vpack.c.bf16 %v2191, %v2190
        %v2203 = vpack.c.bf16 %v2193, %v2192
        %v2204 = vpack.c.bf16 %v2195, %v2194
        %v2205 = vpack.c.bf16 %v2197, %v2196
        %v2206 = vld [vmem:[#allocation10] sm:$0xf]
        %v2207 = vld [vmem:[#allocation10 + $0x4] sm:$0xf]
        %v2208 = vld [vmem:[#allocation10 + $0x8] sm:$0xf]
        %v2209 = vld [vmem:[#allocation10 + $0xc] sm:$0xf]
        %v2210 = vld [vmem:[#allocation10 + $0x10] sm:$0xf]
        %v2211 = vld [vmem:[#allocation10 + $0x14] sm:$0xf]
        %v2212 = vld [vmem:[#allocation10 + $0x18] sm:$0xf]
        %v2213 = vld [vmem:[#allocation10 + $0x1c] sm:$0xf]
        %v2214 = vld [vmem:[#allocation10 + $0x20] sm:$0xf]
        %v2215 = vld [vmem:[#allocation10 + $0x24] sm:$0xf]
        %v2216 = vld [vmem:[#allocation10 + $0x28] sm:$0xf]
        %v2217 = vld [vmem:[#allocation10 + $0x2c] sm:$0xf]
        %v2218 = vld [vmem:[#allocation10 + $0x30] sm:$0xf]
        %v2219 = vld [vmem:[#allocation10 + $0x34] sm:$0xf]
        %v2220 = vld [vmem:[#allocation10 + $0x38] sm:$0xf]
        %v2221 = vld [vmem:[#allocation10 + $0x3c] sm:$0xf]
        %v2222 = vld [vmem:[%s14] sm:$0x1]
        %v2224 = vperm.slane %v2222, 0
        %v2242 = vunpack.c.l.b16 %v2206
        %v2243 = vunpack.c.l.b16 %v2207
        %v2244 = vunpack.c.l.b16 %v2208
        %v2245 = vunpack.c.l.b16 %v2209
        %v2246 = vunpack.c.l.b16 %v2210
        %v2247 = vunpack.c.l.b16 %v2211
        %v2248 = vunpack.c.l.b16 %v2212
        %v2249 = vunpack.c.l.b16 %v2213
        %v2250 = vunpack.c.l.b16 %v2214
        %v2251 = vunpack.c.l.b16 %v2215
        %v2252 = vunpack.c.l.b16 %v2216
        %v2253 = vunpack.c.l.b16 %v2217
        %v2254 = vunpack.c.l.b16 %v2218
        %v2255 = vunpack.c.l.b16 %v2219
        %v2256 = vunpack.c.l.b16 %v2220
        %v2257 = vunpack.c.l.b16 %v2221
        %v2258 = vpack.c.b16 %v2243, %v2242
        %v2259 = vpack.c.b16 %v2245, %v2244
        %v2260 = vpack.c.b16 %v2247, %v2246
        %v2261 = vpack.c.b16 %v2249, %v2248
        %v2262 = vpack.c.b16 %v2251, %v2250
        %v2263 = vpack.c.b16 %v2253, %v2252
        %v2264 = vpack.c.b16 %v2255, %v2254
        %v2265 = vpack.c.b16 %v2257, %v2256
        %2274 = vmatpush.bf16.msra.mxu0 %v2265
        %2275 = vmatpush.bf16.msra.mxu0 %v2264
        %2276 = vmatpush.bf16.msra.mxu0 %v2263
        %2277 = vmatpush.bf16.msra.mxu0 %v2262
        %2278 = vmatpush.bf16.msra.mxu0 %v2261
        %2279 = vmatpush.bf16.msra.mxu0 %v2260
        %2280 = vmatpush.bf16.msra.mxu0 %v2259
        %2281 = vmatpush.bf16.msra.mxu0 %v2258
        %2282 = vmatmul.bf16.gmra.mxu0 %v2198
        %v2283 = vpop.f32.mrf.mxu0
        %v2284 = vadd.f32 %v2224, %v2283
        %v2285 = vpop.f32.mrf.mxu0
        %v2286 = vadd.f32 %v2224, %v2285
        %2287 = vmatmul.bf16.gmra.mxu0 %v2199
        %v2288 = vpop.f32.mrf.mxu0
        %v2289 = vadd.f32 %v2224, %v2288
        %v2290 = vpop.f32.mrf.mxu0
        %v2291 = vadd.f32 %v2224, %v2290
        %2292 = vmatmul.bf16.gmra.mxu0 %v2200
        %v2293 = vpop.f32.mrf.mxu0
        %v2294 = vadd.f32 %v2224, %v2293
        %v2295 = vpop.f32.mrf.mxu0
        %v2296 = vadd.f32 %v2224, %v2295
        %2297 = vmatmul.bf16.gmra.mxu0 %v2201
        %v2298 = vpop.f32.mrf.mxu0
        %v2299 = vadd.f32 %v2224, %v2298
        %v2300 = vpop.f32.mrf.mxu0
        %v2301 = vadd.f32 %v2224, %v2300
        %2302 = vmatmul.bf16.gmra.mxu0 %v2202
        %v2303 = vpop.f32.mrf.mxu0
        %v2304 = vadd.f32 %v2224, %v2303
        %v2305 = vpop.f32.mrf.mxu0
        %v2306 = vadd.f32 %v2224, %v2305
        %2307 = vmatmul.bf16.gmra.mxu0 %v2203
        %v2308 = vpop.f32.mrf.mxu0
        %v2309 = vadd.f32 %v2224, %v2308
        %v2310 = vpop.f32.mrf.mxu0
        %v2311 = vadd.f32 %v2224, %v2310
        %2312 = vmatmul.bf16.gmra.mxu0 %v2204
        %v2313 = vpop.f32.mrf.mxu0
        %v2314 = vadd.f32 %v2224, %v2313
        %v2315 = vpop.f32.mrf.mxu0
        %v2316 = vadd.f32 %v2224, %v2315
        %2317 = vmatmul.bf16.gmra.mxu0 %v2205
        %v2318 = vpop.f32.mrf.mxu0
        %v2319 = vadd.f32 %v2224, %v2318
        %v2320 = vpop.f32.mrf.mxu0
        %v2321 = vadd.f32 %v2224, %v2320
        %2322 = vdwg.mxu0
        %2323 = vst [vmem:[%s580] sm:$0xff] %v2284
        %2324 = vst [vmem:[%s580 + $0x8] sm:$0xff] %v2286
        %2325 = vst [vmem:[%s580 + $0x10] sm:$0xff] %v2289
        %2326 = vst [vmem:[%s580 + $0x18] sm:$0xff] %v2291
        %2327 = vst [vmem:[%s580 + $0x20] sm:$0xff] %v2294
        %2328 = vst [vmem:[%s580 + $0x28] sm:$0xff] %v2296
        %2329 = vst [vmem:[%s580 + $0x30] sm:$0xff] %v2299
        %2330 = vst [vmem:[%s580 + $0x38] sm:$0xff] %v2301
        %2331 = vst [vmem:[%s580 + $0x40] sm:$0xff] %v2304
        %2332 = vst [vmem:[%s580 + $0x48] sm:$0xff] %v2306
        %2333 = vst [vmem:[%s580 + $0x50] sm:$0xff] %v2309
        %2334 = vst [vmem:[%s580 + $0x58] sm:$0xff] %v2311
        %2335 = vst [vmem:[%s580 + $0x60] sm:$0xff] %v2314
        %2336 = vst [vmem:[%s580 + $0x68] sm:$0xff] %v2316
        %2337 = vst [vmem:[%s580 + $0x70] sm:$0xff] %v2319
        %2338 = vst [vmem:[%s580 + $0x78] sm:$0xff] %v2321
        %s2339 = sand.u32 %s362, 1
        %s2340 = scalar_lea.sflag [#allocation4], %s2339
        %s2341 = sand.u32 %s362, 1
        %s2342 = smul.addr %s2341, 128
        %s2343 = scalar_lea.vmem [#allocation11], %s2342
        // Predicated region
        $region101: #{tpu_custom_call.1} parent=79 // pred_check
          %p2344 = pneg %p372
        $region102: #{tpu_custom_call.1} parent=79 // pred_check_branch
          %2346 = sbr.rel (%p2344) target = $region104
        $region103: #{tpu_custom_call.1} parent=79 // pred_region
          %s2347 = smul.u32 16, %s34
          %2349 = vsyncadd %s2340, 0
          %s2350 = smul.addr %s2347, 8
          %s2351 = scalar_lea.hbm %s15, %s2350
          %s2352 = sshll.u32 %s2343, 4
          %s2353 = int_to_ptr.vmem [resolvable:$true] %s2352
          %s2354 = sshll.u32 %s2351, 4
          %s2355 = int_to_ptr.hbm [resolvable:$true] %s2354
          %2360 = dma.vmem_to_hbm [thread:$0]  %s2353, 2048, %s2355, %s2340, 128, 128, 8
        $region104: #{tpu_custom_call.1} parent=79 // pred_fallthru
          _
      $region80: #{tpu_custom_call.1} parent=5 // pred_fallthru
        _
      %p2361 = scmp.le.s32.totalorder 2, %s29
      // Predicated region
      $region105: #{tpu_custom_call.1} parent=5 // pred_check
        %p2362 = pneg %p2361
      $region106: #{tpu_custom_call.1} parent=5 // pred_check_branch
        %2364 = sbr.rel (%p2362) target = $region108
      $region107: #{tpu_custom_call.1} parent=5 // pred_region
        %s2365 = ssub.s32 %s29, 2
        // Predicated region
        $region109: #{tpu_custom_call.1} parent=107 // pred_check
          %p2366 = pneg %p378
        $region110: #{tpu_custom_call.1} parent=107 // pred_check_branch
          %2368 = sbr.rel (%p2366) target = $region112
        $region111: #{tpu_custom_call.1} parent=107 // pred_region
          %s2369 = sand.u32 %s363, 1
          %s2370 = scalar_lea.sflag [#allocation4], %s2369
          %s2371 = sand.u32 %s363, 1
          %s2372 = smul.addr %s2371, 128
          %s2373 = scalar_lea.vmem [#allocation11], %s2372
          %2375 = dma.done %s2370, 2048
        $region112: #{tpu_custom_call.1} parent=107 // pred_fallthru
          _
      $region108: #{tpu_custom_call.1} parent=5 // pred_fallthru
        _
    $region6: #{tpu_custom_call.1} parent=1 // loop_footer
      %s33 = sadd.s32 1, %s29
    $region7: #{tpu_custom_call.1} parent=1 // loop_footer_branch
      %28 = sbr.rel target = $region3
    $region8: #{tpu_custom_call.1} parent=1 // loop_exit
      _
    %2376 = vsyncpa [#allocation3], 1
    %s2377 = scalar_lea.sflag [#allocation3], 1
    %2378 = vsyncpa %s2377, 1
    %2379 = vsyncpa [#allocation6], 1
    %2380 = vsyncpa [#allocation9], 1
    %2381 = vsyncpa [#allocation4], 1
    %s2382 = scalar_lea.sflag [#allocation4], 1
    %2383 = vsyncpa %s2382, 1

</llo_original>
